<compile_context>
chip_gen: v7x
topology: tpu7x:2x2x1
jax: 0.10.0
libtpu: 0.0.40
codegen_flags: <defaults>
</compile_context>

<pallas_src>
import numpy as np
import jax
import jax.numpy as jnp
from jax.experimental import pallas as pl
from jax.experimental.pallas import tpu as pltpu

LANE = 128          # TPU lane width; feature axes are padded to this
BN_EPS = 1e-5
# MXU operand dtype.  Accumulation / BN math stays f32 (v5e has no bf16 VPU).
MATMUL_DTYPE = jnp.bfloat16


def _full_spec(shape):
    # Whole-array block; empty grid -> index_map takes no args.
    return pl.BlockSpec(shape, lambda: (0,) * len(shape))


# ---------------------------------------------------------------------------
# Fused kernel
# ---------------------------------------------------------------------------
def _make_bites_kernel(n_sblocks, n_rblocks):
    """Build the fused BITES forward kernel for fixed layer counts."""

    def kernel(x_ref, sw0_ref, sw_ref, sp_ref, sow_ref, sob_ref,
               rw0_ref, rw_ref, rp_ref, row_ref, o_ref):

        def dot(a, w):
            # a, w already bf16; accumulate in f32 on the MXU.
            return jnp.dot(a, w, preferred_element_type=jnp.float32)

        def dense_block(a_in, w, p):
            # Linear -> ReLU -> BatchNorm1d (training-mode batch statistics).
            # Single-pass stats (sum, sum-of-squares) instead of
            # mean-then-centered-variance: one fewer dependent full-tile
            # traversal on the per-layer critical path.
            # p rows: 0 = bias, 1 = gamma, 2 = beta (padded lanes stay 0).
            z = dot(a_in, w) + p[0:1, :]
            a = jnp.maximum(z, 0.0)
            inv_n = 1.0 / a.shape[0]
            mean = jnp.sum(a, axis=0, keepdims=True) * inv_n
            ex2 = jnp.sum(a * a, axis=0, keepdims=True) * inv_n
            var = jnp.maximum(ex2 - mean * mean, 0.0)
            xhat = (a - mean) * jax.lax.rsqrt(var + BN_EPS)
            # gamma/beta are zero-padded -> padded lanes stay exactly 0 and
            # are safe to feed into later matmuls.
            return xhat * p[1:2, :] + p[2:3, :]       # f32

        # ---- shared net (MLPVanilla1): block0 then residual blocks ----
        x_bf = x_ref[...].astype(MATMUL_DTYPE)            # (B, in_f)
        h = dense_block(x_bf, sw0_ref[...], sp_ref[0])    # (B, 128) f32
        for l in range(1, n_sblocks):
            # residual add folded into the kernel (stays in vregs, f32)
            h = h + dense_block(h.astype(MATMUL_DTYPE), sw_ref[l - 1], sp_ref[l])
        features = dot(h.astype(MATMUL_DTYPE), sow_ref[...]) + sob_ref[0:1, :]

        # ---- both risk heads in one pass ----
        # layer 0: (B,128)x(128,256) with head0 in lanes [0,128) and head1 in
        # lanes [128,256) (heads side-by-side, no duplicated features and no
        # zero-block MACs along K); layers 1.. are block-diagonal 256-wide.
        r = dense_block(features.astype(MATMUL_DTYPE), rw0_ref[...], rp_ref[0])
        for l in range(1, n_rblocks):
            r = dense_block(r.astype(MATMUL_DTYPE), rw_ref[l - 1], rp_ref[l])
        # final projection: (B,256)x(256,128); head0 -> lanes [0,out_f),
        # head1 -> lanes [out_f, 2*out_f); no output bias.
        heads = dot(r.astype(MATMUL_DTYPE), row_ref[...])

        # Lane-aligned, unmasked 128-lane stores; no concat intermediate.
        o_ref[:, :LANE] = features
        o_ref[:, LANE:2 * LANE] = heads

    return kernel


# ---------------------------------------------------------------------------
# Deterministic (logical) parameter construction
# ---------------------------------------------------------------------------
def _kaiming_normal(key, fan_in, fan_out):
    # kaiming_normal_(nonlinearity='relu'): std = sqrt(2 / fan_in)
    std = (2.0 / fan_in) ** 0.5
    return jax.random.normal(key, (fan_in, fan_out), jnp.float32) * std


def _uniform_weight(key, fan_in, fan_out):
    bound = 1.0 / (fan_in ** 0.5)
    return jax.random.uniform(key, (fan_in, fan_out), jnp.float32, -bound, bound)


def _uniform_bias(key, fan_in, fan_out):
    bound = 1.0 / (fan_in ** 0.5)
    return jax.random.uniform(key, (fan_out,), jnp.float32, -bound, bound)


def make_bites_params(key, in_features, num_nodes_shared, num_nodes_indiv,
                      out_features):
    keys = iter(jax.random.split(key, 64))

    def make_block(k_in, n_in, n_out):
        kw, kb = jax.random.split(k_in)
        w = _kaiming_normal(kw, n_in, n_out)
        b = _uniform_bias(kb, n_in, n_out)
        gamma = jnp.ones((n_out,), jnp.float32)     # BatchNorm1d weight init
        beta = jnp.zeros((n_out,), jnp.float32)     # BatchNorm1d bias init
        return (w, b, gamma, beta)

    # shared net: MLPVanilla1(in_features, num_nodes_shared[:-1], num_nodes_shared[-1])
    shared_nodes = [in_features] + list(num_nodes_shared[:-1])
    shared_blocks = [make_block(next(keys), n_in, n_out)
                     for n_in, n_out in zip(shared_nodes[:-1], shared_nodes[1:])]
    shared_out_w = _uniform_weight(next(keys), shared_nodes[-1], num_nodes_shared[-1])
    shared_out_b = _uniform_bias(next(keys), shared_nodes[-1], num_nodes_shared[-1])

    # risk nets: MLPVanilla(num_nodes_shared[-1], num_nodes_indiv, out_features,
    #                       output_bias=False)
    risk = []
    for _ in range(2):
        nodes = [num_nodes_shared[-1]] + list(num_nodes_indiv)
        blocks = [make_block(next(keys), n_in, n_out)
                  for n_in, n_out in zip(nodes[:-1], nodes[1:])]
        out_w = _uniform_weight(next(keys), nodes[-1], out_features)
        risk.append(dict(blocks=blocks, out_w=out_w))

    return dict(shared=dict(blocks=shared_blocks, out_w=shared_out_w,
                            out_b=shared_out_b),
                risk=risk)


# ---------------------------------------------------------------------------
# Packing into lane-padded, fused kernel parameters (bf16 weights)
# ---------------------------------------------------------------------------
def _pad_weight(w, rows, cols):
    assert w.shape[0] <= rows and w.shape[1] <= cols
    return jnp.zeros((rows, cols), jnp.float32).at[:w.shape[0], :w.shape[1]].set(w)


def _pack_pgb(b, g, bt, width):
    # One (8, width) f32 tile per layer: row0 bias, row1 gamma, row2 beta.
    # IMPORTANT: gamma/beta on padded lanes MUST remain 0 so padded lanes stay
    # exactly 0 through BatchNorm (they feed later matmuls).
    p = jnp.zeros((8, width), jnp.float32)
    p = p.at[0, :b.shape[0]].set(b)
    p = p.at[1, :g.shape[0]].set(g)
    p = p.at[2, :bt.shape[0]].set(bt)
    return p


def pack_bites_params(params, out_features):
    wdt = MATMUL_DTYPE
    sp_ = params["shared"]
    blocks = sp_["blocks"]
    n_s = len(blocks)
    for (w, _, _, _) in blocks:
        # TODO(synk): widths > 128 would need multi-tile packing; not needed
        # at these model sizes.
        assert max(w.shape) <= LANE
    assert 2 * out_features <= LANE
    in_f = blocks[0][0].shape[0]

    # First shared block weight kept (in_f, 128): the raw (B, in_f) input is
    # fed straight to the MXU (no wrapper-side zero-pad of x).
    sw0 = _pad_weight(blocks[0][0], in_f, LANE).astype(wdt)
    rest = [_pad_weight(w, LANE, LANE).astype(wdt) for (w, _, _, _) in blocks[1:]]
    if not rest:                                   # never read by the kernel
        rest = [jnp.zeros((LANE, LANE), wdt)]
    sw = jnp.stack(rest)
    spk = jnp.stack([_pack_pgb(b, g, bt, LANE) for (_, b, g, bt) in blocks])

    sow = _pad_weight(sp_["out_w"], LANE, LANE).astype(wdt)
    sob = jnp.zeros((8, LANE), jnp.float32).at[0, :sp_["out_b"].shape[0]].set(sp_["out_b"])

    # Risk heads.
    r_heads = params["risk"]
    n_r = len(r_heads[0]["blocks"])

    # Layer 0: heads side-by-side -> (128, 256).
    rw0 = jnp.zeros((LANE, 2 * LANE), jnp.float32)
    rp0 = jnp.zeros((8, 2 * LANE), jnp.float32)
    for hdx, rh in enumerate(r_heads):
        w, b, g, bt = rh["blocks"][0]
        co = hdx * LANE
        rw0 = rw0.at[:w.shape[0], co:co + w.shape[1]].set(w)
        rp0 = rp0.at[0, co:co + b.shape[0]].set(b)
        rp0 = rp0.at[1, co:co + g.shape[0]].set(g)
        rp0 = rp0.at[2, co:co + bt.shape[0]].set(bt)
    rw0 = rw0.astype(wdt)

    # Layers 1..: block-diagonal (256, 256) tiles.
    # TODO(synk): on v5e (128-wide MXU) two per-head 128x128 dots would avoid
    # multiplying the zero off-diagonal blocks; keep 256-wide on v6e/v7x.
    rw_layers, rp_layers = [], [rp0]
    for l in range(1, n_r):
        wmat = jnp.zeros((2 * LANE, 2 * LANE), jnp.float32)
        pmat = jnp.zeros((8, 2 * LANE), jnp.float32)
        for hdx, rh in enumerate(r_heads):
            w, b, g, bt = rh["blocks"][l]
            ro = co = hdx * LANE
            wmat = wmat.at[ro:ro + w.shape[0], co:co + w.shape[1]].set(w)
            pmat = pmat.at[0, co:co + b.shape[0]].set(b)
            pmat = pmat.at[1, co:co + g.shape[0]].set(g)
            pmat = pmat.at[2, co:co + bt.shape[0]].set(bt)
        rw_layers.append(wmat)
        rp_layers.append(pmat)
    if not rw_layers:                              # never read by the kernel
        rw_layers = [jnp.zeros((2 * LANE, 2 * LANE), jnp.float32)]
    rw = jnp.stack(rw_layers).astype(wdt)
    rp = jnp.stack(rp_layers)

    # Final projection: (256, 128); head0 -> columns [0, out_f),
    # head1 -> columns [out_f, 2*out_f).  Single 128-lane output tile.
    row = jnp.zeros((2 * LANE, LANE), jnp.float32)
    for hdx, rh in enumerate(r_heads):
        w = rh["out_w"]
        row = row.at[hdx * LANE:hdx * LANE + w.shape[0],
                     hdx * out_features:hdx * out_features + w.shape[1]].set(w)
    row = row.astype(wdt)

    packed = dict(sw0=sw0, sw=sw, sp=spk, sow=sow, sob=sob,
                  rw0=rw0, rw=rw, rp=rp, row=row)
    meta = dict(n_sblocks=n_s, n_rblocks=n_r, in_features=in_f,
                feat_dim=sp_["out_w"].shape[1], out_features=out_features)
    return packed, meta


# ---------------------------------------------------------------------------
# Fused forward
# ---------------------------------------------------------------------------
def build_bites_forward(meta):
    n_s, n_r = meta["n_sblocks"], meta["n_rblocks"]
    feat_dim, out_f = meta["feat_dim"], meta["out_features"]
    kernel = _make_bites_kernel(n_s, n_r)

    # TODO(synk): for very large batches (and v7x megacore / pipelining) add a
    # batch grid with cross-tile accumulation of BN sum / sum-of-squares;
    # whole-batch-in-one-tile is kept here to match PyTorch BatchNorm exactly.
    @jax.jit
    def forward(packed, x):
        batch = x.shape[0]
        args = (x, packed["sw0"], packed["sw"], packed["sp"], packed["sow"],
                packed["sob"], packed["rw0"], packed["rw"], packed["rp"],
                packed["row"])
        # Size the scoped VMEM limit to the (static) batch: weights + a
        # generous per-row live-activation bound, clamped under v7x physical.
        weight_bytes = sum(int(np.prod(a.shape)) * a.dtype.itemsize
                           for a in args[1:])
        est = 2 * weight_bytes + batch * 8192 * 2 + (4 << 20)
        vmem_limit = int(min(max(est, 32 << 20), 48 << 20))

        out = pl.pallas_call(
            kernel,
            out_shape=jax.ShapeDtypeStruct((batch, 2 * LANE), jnp.float32),
            in_specs=[_full_spec(a.shape) for a in args],
            out_specs=_full_spec((batch, 2 * LANE)),
            compiler_params=pltpu.CompilerParams(vmem_limit_bytes=vmem_limit),
        )(*args)
        features = out[:, :feat_dim]
        h0 = out[:, LANE:LANE + out_f]
        h1 = out[:, LANE + out_f:LANE + 2 * out_f]
        return h0, h1, features

    return forward


# ---------------------------------------------------------------------------
# Pure-JAX reference (for correctness check of the fused/packed kernel)
# ---------------------------------------------------------------------------
def _ref_forward(params, x):
    def block(h, w, b, g, bt):
        z = h @ w + b
        a = jnp.maximum(z, 0.0)
        mean = jnp.mean(a, axis=0, keepdims=True)
        var = jnp.mean(jnp.square(a - mean), axis=0, keepdims=True)
        return (a - mean) * jax.lax.rsqrt(var + BN_EPS) * g + bt

    sp = params["shared"]
    h = block(x, *sp["blocks"][0])
    for blk in sp["blocks"][1:]:
        h = h + block(h, *blk)
    features = h @ sp["out_w"] + sp["out_b"]

    heads = []
    for rp in params["risk"]:
        r = features
        for blk in rp["blocks"]:
            r = block(r, *blk)
        heads.append(r @ rp["out_w"])       # no output bias
    return heads[0], heads[1], features


if __name__ == "__main__":
    # Small shapes consistent with the module (residual middle block requires
    # equal widths in the shared net).
    batch = 8
    in_features = 16
    num_nodes_shared = [32, 32, 16]
    num_nodes_indiv = [32, 32]
    out_features = 1

    key = jax.random.PRNGKey(0)
    k_params, k_x = jax.random.split(key)
    params = make_bites_params(k_params, in_features, num_nodes_shared,
                               num_nodes_indiv, out_features)
    packed, meta = pack_bites_params(params, out_features)
    forward = build_bites_forward(meta)

    x = jax.random.normal(k_x, (batch, in_features), jnp.float32)

    h0, h1, features = forward(packed, x)
    jax.block_until_ready((h0, h1, features))

    assert h0.shape == (batch, out_features)
    assert h1.shape == (batch, out_features)
    assert features.shape == (batch, num_nodes_shared[-1])

    # Correctness check against a pure-JAX f32 reference.  Tolerance covers
    # bf16-stored weights/activations in the kernel (XLA's default f32 matmul
    # on TPU is already a single bf16 pass, so this costs little accuracy).
    r0, r1, rf = _ref_forward(params, x)
    np.testing.assert_allclose(np.asarray(h0), np.asarray(r0), rtol=5e-2, atol=5e-2)
    np.testing.assert_allclose(np.asarray(h1), np.asarray(r1), rtol=5e-2, atol=5e-2)
    np.testing.assert_allclose(np.asarray(features), np.asarray(rf), rtol=5e-2, atol=5e-2)

    # TODO(synk): dropout is None in BITES defaults so no dropout kernel is
    # needed; BatchNorm running-statistics updates (training-side state) are
    # not modeled since they do not affect the forward outputs.
    print("KERNEL_OK")
</pallas_src>

<mosaic_0001>
module attributes {stable_mosaic.version = 11 : i64} {
  func.func @kernel(%arg0: memref<8x16xf32, #tpu.memory_space<vmem>>, %arg1: memref<16x128xbf16, #tpu.memory_space<vmem>>, %arg2: memref<1x128x128xbf16, #tpu.memory_space<vmem>>, %arg3: memref<2x8x128xf32, #tpu.memory_space<vmem>>, %arg4: memref<128x128xbf16, #tpu.memory_space<vmem>>, %arg5: memref<8x128xf32, #tpu.memory_space<vmem>>, %arg6: memref<128x256xbf16, #tpu.memory_space<vmem>>, %arg7: memref<1x256x256xbf16, #tpu.memory_space<vmem>>, %arg8: memref<2x8x256xf32, #tpu.memory_space<vmem>>, %arg9: memref<256x128xbf16, #tpu.memory_space<vmem>>, %arg10: memref<8x256xf32, #tpu.memory_space<vmem>>) attributes {dimension_semantics = [], scalar_prefetch = 0 : i64, scratch_operands = 0 : i64, tpu.core_type = #tpu.core_type<tc>} {
    %c0 = arith.constant 0 : index
    %c0_0 = arith.constant 0 : index
    %0 = vector.load %arg0[%c0, %c0_0] : memref<8x16xf32, #tpu.memory_space<vmem>>, vector<8x16xf32>
    %1 = arith.truncf %0 : vector<8x16xf32> to vector<8x16xbf16>
    %c0_1 = arith.constant 0 : index
    %c0_2 = arith.constant 0 : index
    %2 = vector.load %arg1[%c0_1, %c0_2] : memref<16x128xbf16, #tpu.memory_space<vmem>>, vector<16x128xbf16>
    %c0_3 = arith.constant 0 : index
    %c0_4 = arith.constant 0 : index
    %c0_5 = arith.constant 0 : index
    %3 = vector.load %arg3[%c0_3, %c0_4, %c0_5] : memref<2x8x128xf32, #tpu.memory_space<vmem>>, vector<1x8x128xf32>
    %4 = vector.shape_cast %3 : vector<1x8x128xf32> to vector<8x128xf32>
    %cst = arith.constant dense<0.000000e+00> : vector<8x128xf32>
    %5 = tpu.matmul %1, %2, %cst {dimension_numbers = #tpu.dot_dimension_numbers<[1], [0], [0], [1], [0, 0, 1, 1], [], []>} : vector<8x16xbf16>, vector<16x128xbf16>, vector<8x128xf32> -> vector<8x128xf32>
    %6 = vector.extract_strided_slice %4 {offsets = [0, 0], sizes = [1, 128], strides = [1, 1]} : vector<8x128xf32> to vector<1x128xf32>
    %7 = vector.broadcast %6 : vector<1x128xf32> to vector<8x128xf32>
    %8 = arith.addf %5, %7 : vector<8x128xf32>
    %cst_6 = arith.constant 0.000000e+00 : f32
    %9 = vector.broadcast %cst_6 : f32 to vector<8x128xf32>
    %10 = arith.maximumf %8, %9 : vector<8x128xf32>
    %cst_7 = arith.constant dense<0.000000e+00> : vector<128xf32>
    %11 = vector.multi_reduction <add>, %10, %cst_7 [0] : vector<8x128xf32> to vector<128xf32>
    %12 = vector.shape_cast %11 : vector<128xf32> to vector<1x128xf32>
    %cst_8 = arith.constant 1.250000e-01 : f32
    %13 = vector.broadcast %cst_8 : f32 to vector<1x128xf32>
    %14 = arith.mulf %12, %13 : vector<1x128xf32>
    %15 = arith.mulf %10, %10 : vector<8x128xf32>
    %cst_9 = arith.constant dense<0.000000e+00> : vector<128xf32>
    %16 = vector.multi_reduction <add>, %15, %cst_9 [0] : vector<8x128xf32> to vector<128xf32>
    %17 = vector.shape_cast %16 : vector<128xf32> to vector<1x128xf32>
    %cst_10 = arith.constant 1.250000e-01 : f32
    %18 = vector.broadcast %cst_10 : f32 to vector<1x128xf32>
    %19 = arith.mulf %17, %18 : vector<1x128xf32>
    %20 = arith.mulf %14, %14 : vector<1x128xf32>
    %21 = arith.subf %19, %20 : vector<1x128xf32>
    %cst_11 = arith.constant 0.000000e+00 : f32
    %22 = vector.broadcast %cst_11 : f32 to vector<1x128xf32>
    %23 = arith.maximumf %21, %22 : vector<1x128xf32>
    %24 = vector.broadcast %14 : vector<1x128xf32> to vector<8x128xf32>
    %25 = arith.subf %10, %24 : vector<8x128xf32>
    %cst_12 = arith.constant 9.99999974E-6 : f32
    %26 = vector.broadcast %cst_12 : f32 to vector<1x128xf32>
    %27 = arith.addf %23, %26 : vector<1x128xf32>
    %28 = math.rsqrt %27 : vector<1x128xf32>
    %29 = vector.broadcast %28 : vector<1x128xf32> to vector<8x128xf32>
    %30 = arith.mulf %25, %29 : vector<8x128xf32>
    %31 = vector.extract_strided_slice %4 {offsets = [1, 0], sizes = [1, 128], strides = [1, 1]} : vector<8x128xf32> to vector<1x128xf32>
    %32 = vector.broadcast %31 : vector<1x128xf32> to vector<8x128xf32>
    %33 = arith.mulf %30, %32 : vector<8x128xf32>
    %34 = vector.extract_strided_slice %4 {offsets = [2, 0], sizes = [1, 128], strides = [1, 1]} : vector<8x128xf32> to vector<1x128xf32>
    %35 = vector.broadcast %34 : vector<1x128xf32> to vector<8x128xf32>
    %36 = arith.addf %33, %35 : vector<8x128xf32>
    %37 = arith.truncf %36 : vector<8x128xf32> to vector<8x128xbf16>
    %c0_13 = arith.constant 0 : index
    %c0_14 = arith.constant 0 : index
    %c0_15 = arith.constant 0 : index
    %38 = vector.load %arg2[%c0_13, %c0_14, %c0_15] : memref<1x128x128xbf16, #tpu.memory_space<vmem>>, vector<1x128x128xbf16>
    %39 = vector.shape_cast %38 : vector<1x128x128xbf16> to vector<128x128xbf16>
    %c1 = arith.constant 1 : index
    %c0_16 = arith.constant 0 : index
    %c0_17 = arith.constant 0 : index
    %40 = vector.load %arg3[%c1, %c0_16, %c0_17] : memref<2x8x128xf32, #tpu.memory_space<vmem>>, vector<1x8x128xf32>
    %41 = vector.shape_cast %40 : vector<1x8x128xf32> to vector<8x128xf32>
    %cst_18 = arith.constant dense<0.000000e+00> : vector<8x128xf32>
    %42 = tpu.matmul %37, %39, %cst_18 {dimension_numbers = #tpu.dot_dimension_numbers<[1], [0], [0], [1], [0, 0, 1, 1], [], []>} : vector<8x128xbf16>, vector<128x128xbf16>, vector<8x128xf32> -> vector<8x128xf32>
    %43 = vector.extract_strided_slice %41 {offsets = [0, 0], sizes = [1, 128], strides = [1, 1]} : vector<8x128xf32> to vector<1x128xf32>
    %44 = vector.broadcast %43 : vector<1x128xf32> to vector<8x128xf32>
    %45 = arith.addf %42, %44 : vector<8x128xf32>
    %cst_19 = arith.constant 0.000000e+00 : f32
    %46 = vector.broadcast %cst_19 : f32 to vector<8x128xf32>
    %47 = arith.maximumf %45, %46 : vector<8x128xf32>
    %cst_20 = arith.constant dense<0.000000e+00> : vector<128xf32>
    %48 = vector.multi_reduction <add>, %47, %cst_20 [0] : vector<8x128xf32> to vector<128xf32>
    %49 = vector.shape_cast %48 : vector<128xf32> to vector<1x128xf32>
    %cst_21 = arith.constant 1.250000e-01 : f32
    %50 = vector.broadcast %cst_21 : f32 to vector<1x128xf32>
    %51 = arith.mulf %49, %50 : vector<1x128xf32>
    %52 = arith.mulf %47, %47 : vector<8x128xf32>
    %cst_22 = arith.constant dense<0.000000e+00> : vector<128xf32>
    %53 = vector.multi_reduction <add>, %52, %cst_22 [0] : vector<8x128xf32> to vector<128xf32>
    %54 = vector.shape_cast %53 : vector<128xf32> to vector<1x128xf32>
    %cst_23 = arith.constant 1.250000e-01 : f32
    %55 = vector.broadcast %cst_23 : f32 to vector<1x128xf32>
    %56 = arith.mulf %54, %55 : vector<1x128xf32>
    %57 = arith.mulf %51, %51 : vector<1x128xf32>
    %58 = arith.subf %56, %57 : vector<1x128xf32>
    %cst_24 = arith.constant 0.000000e+00 : f32
    %59 = vector.broadcast %cst_24 : f32 to vector<1x128xf32>
    %60 = arith.maximumf %58, %59 : vector<1x128xf32>
    %61 = vector.broadcast %51 : vector<1x128xf32> to vector<8x128xf32>
    %62 = arith.subf %47, %61 : vector<8x128xf32>
    %cst_25 = arith.constant 9.99999974E-6 : f32
    %63 = vector.broadcast %cst_25 : f32 to vector<1x128xf32>
    %64 = arith.addf %60, %63 : vector<1x128xf32>
    %65 = math.rsqrt %64 : vector<1x128xf32>
    %66 = vector.broadcast %65 : vector<1x128xf32> to vector<8x128xf32>
    %67 = arith.mulf %62, %66 : vector<8x128xf32>
    %68 = vector.extract_strided_slice %41 {offsets = [1, 0], sizes = [1, 128], strides = [1, 1]} : vector<8x128xf32> to vector<1x128xf32>
    %69 = vector.broadcast %68 : vector<1x128xf32> to vector<8x128xf32>
    %70 = arith.mulf %67, %69 : vector<8x128xf32>
    %71 = vector.extract_strided_slice %41 {offsets = [2, 0], sizes = [1, 128], strides = [1, 1]} : vector<8x128xf32> to vector<1x128xf32>
    %72 = vector.broadcast %71 : vector<1x128xf32> to vector<8x128xf32>
    %73 = arith.addf %70, %72 : vector<8x128xf32>
    %74 = arith.addf %36, %73 : vector<8x128xf32>
    %75 = arith.truncf %74 : vector<8x128xf32> to vector<8x128xbf16>
    %c0_26 = arith.constant 0 : index
    %c0_27 = arith.constant 0 : index
    %76 = vector.load %arg4[%c0_26, %c0_27] : memref<128x128xbf16, #tpu.memory_space<vmem>>, vector<128x128xbf16>
    %cst_28 = arith.constant dense<0.000000e+00> : vector<8x128xf32>
    %77 = tpu.matmul %75, %76, %cst_28 {dimension_numbers = #tpu.dot_dimension_numbers<[1], [0], [0], [1], [0, 0, 1, 1], [], []>} : vector<8x128xbf16>, vector<128x128xbf16>, vector<8x128xf32> -> vector<8x128xf32>
    %c0_29 = arith.constant 0 : index
    %c0_30 = arith.constant 0 : index
    %78 = vector.load %arg5[%c0_29, %c0_30] : memref<8x128xf32, #tpu.memory_space<vmem>>, vector<1x128xf32>
    %79 = vector.broadcast %78 : vector<1x128xf32> to vector<8x128xf32>
    %80 = arith.addf %77, %79 : vector<8x128xf32>
    %81 = arith.truncf %80 : vector<8x128xf32> to vector<8x128xbf16>
    %c0_31 = arith.constant 0 : index
    %c0_32 = arith.constant 0 : index
    %82 = vector.load %arg6[%c0_31, %c0_32] : memref<128x256xbf16, #tpu.memory_space<vmem>>, vector<128x256xbf16>
    %c0_33 = arith.constant 0 : index
    %c0_34 = arith.constant 0 : index
    %c0_35 = arith.constant 0 : index
    %83 = vector.load %arg8[%c0_33, %c0_34, %c0_35] : memref<2x8x256xf32, #tpu.memory_space<vmem>>, vector<1x8x256xf32>
    %84 = vector.shape_cast %83 : vector<1x8x256xf32> to vector<8x256xf32>
    %cst_36 = arith.constant dense<0.000000e+00> : vector<8x256xf32>
    %85 = tpu.matmul %81, %82, %cst_36 {dimension_numbers = #tpu.dot_dimension_numbers<[1], [0], [0], [1], [0, 0, 1, 1], [], []>} : vector<8x128xbf16>, vector<128x256xbf16>, vector<8x256xf32> -> vector<8x256xf32>
    %86 = vector.extract_strided_slice %84 {offsets = [0, 0], sizes = [1, 256], strides = [1, 1]} : vector<8x256xf32> to vector<1x256xf32>
    %87 = vector.broadcast %86 : vector<1x256xf32> to vector<8x256xf32>
    %88 = arith.addf %85, %87 : vector<8x256xf32>
    %cst_37 = arith.constant 0.000000e+00 : f32
    %89 = vector.broadcast %cst_37 : f32 to vector<8x256xf32>
    %90 = arith.maximumf %88, %89 : vector<8x256xf32>
    %cst_38 = arith.constant dense<0.000000e+00> : vector<256xf32>
    %91 = vector.multi_reduction <add>, %90, %cst_38 [0] : vector<8x256xf32> to vector<256xf32>
    %92 = vector.shape_cast %91 : vector<256xf32> to vector<1x256xf32>
    %cst_39 = arith.constant 1.250000e-01 : f32
    %93 = vector.broadcast %cst_39 : f32 to vector<1x256xf32>
    %94 = arith.mulf %92, %93 : vector<1x256xf32>
    %95 = arith.mulf %90, %90 : vector<8x256xf32>
    %cst_40 = arith.constant dense<0.000000e+00> : vector<256xf32>
    %96 = vector.multi_reduction <add>, %95, %cst_40 [0] : vector<8x256xf32> to vector<256xf32>
    %97 = vector.shape_cast %96 : vector<256xf32> to vector<1x256xf32>
    %cst_41 = arith.constant 1.250000e-01 : f32
    %98 = vector.broadcast %cst_41 : f32 to vector<1x256xf32>
    %99 = arith.mulf %97, %98 : vector<1x256xf32>
    %100 = arith.mulf %94, %94 : vector<1x256xf32>
    %101 = arith.subf %99, %100 : vector<1x256xf32>
    %cst_42 = arith.constant 0.000000e+00 : f32
    %102 = vector.broadcast %cst_42 : f32 to vector<1x256xf32>
    %103 = arith.maximumf %101, %102 : vector<1x256xf32>
    %104 = vector.broadcast %94 : vector<1x256xf32> to vector<8x256xf32>
    %105 = arith.subf %90, %104 : vector<8x256xf32>
    %cst_43 = arith.constant 9.99999974E-6 : f32
    %106 = vector.broadcast %cst_43 : f32 to vector<1x256xf32>
    %107 = arith.addf %103, %106 : vector<1x256xf32>
    %108 = math.rsqrt %107 : vector<1x256xf32>
    %109 = vector.broadcast %108 : vector<1x256xf32> to vector<8x256xf32>
    %110 = arith.mulf %105, %109 : vector<8x256xf32>
    %111 = vector.extract_strided_slice %84 {offsets = [1, 0], sizes = [1, 256], strides = [1, 1]} : vector<8x256xf32> to vector<1x256xf32>
    %112 = vector.broadcast %111 : vector<1x256xf32> to vector<8x256xf32>
    %113 = arith.mulf %110, %112 : vector<8x256xf32>
    %114 = vector.extract_strided_slice %84 {offsets = [2, 0], sizes = [1, 256], strides = [1, 1]} : vector<8x256xf32> to vector<1x256xf32>
    %115 = vector.broadcast %114 : vector<1x256xf32> to vector<8x256xf32>
    %116 = arith.addf %113, %115 : vector<8x256xf32>
    %117 = arith.truncf %116 : vector<8x256xf32> to vector<8x256xbf16>
    %c0_44 = arith.constant 0 : index
    %c0_45 = arith.constant 0 : index
    %c0_46 = arith.constant 0 : index
    %118 = vector.load %arg7[%c0_44, %c0_45, %c0_46] : memref<1x256x256xbf16, #tpu.memory_space<vmem>>, vector<1x256x256xbf16>
    %119 = vector.shape_cast %118 : vector<1x256x256xbf16> to vector<256x256xbf16>
    %c1_47 = arith.constant 1 : index
    %c0_48 = arith.constant 0 : index
    %c0_49 = arith.constant 0 : index
    %120 = vector.load %arg8[%c1_47, %c0_48, %c0_49] : memref<2x8x256xf32, #tpu.memory_space<vmem>>, vector<1x8x256xf32>
    %121 = vector.shape_cast %120 : vector<1x8x256xf32> to vector<8x256xf32>
    %cst_50 = arith.constant dense<0.000000e+00> : vector<8x256xf32>
    %122 = tpu.matmul %117, %119, %cst_50 {dimension_numbers = #tpu.dot_dimension_numbers<[1], [0], [0], [1], [0, 0, 1, 1], [], []>} : vector<8x256xbf16>, vector<256x256xbf16>, vector<8x256xf32> -> vector<8x256xf32>
    %123 = vector.extract_strided_slice %121 {offsets = [0, 0], sizes = [1, 256], strides = [1, 1]} : vector<8x256xf32> to vector<1x256xf32>
    %124 = vector.broadcast %123 : vector<1x256xf32> to vector<8x256xf32>
    %125 = arith.addf %122, %124 : vector<8x256xf32>
    %cst_51 = arith.constant 0.000000e+00 : f32
    %126 = vector.broadcast %cst_51 : f32 to vector<8x256xf32>
    %127 = arith.maximumf %125, %126 : vector<8x256xf32>
    %cst_52 = arith.constant dense<0.000000e+00> : vector<256xf32>
    %128 = vector.multi_reduction <add>, %127, %cst_52 [0] : vector<8x256xf32> to vector<256xf32>
    %129 = vector.shape_cast %128 : vector<256xf32> to vector<1x256xf32>
    %cst_53 = arith.constant 1.250000e-01 : f32
    %130 = vector.broadcast %cst_53 : f32 to vector<1x256xf32>
    %131 = arith.mulf %129, %130 : vector<1x256xf32>
    %132 = arith.mulf %127, %127 : vector<8x256xf32>
    %cst_54 = arith.constant dense<0.000000e+00> : vector<256xf32>
    %133 = vector.multi_reduction <add>, %132, %cst_54 [0] : vector<8x256xf32> to vector<256xf32>
    %134 = vector.shape_cast %133 : vector<256xf32> to vector<1x256xf32>
    %cst_55 = arith.constant 1.250000e-01 : f32
    %135 = vector.broadcast %cst_55 : f32 to vector<1x256xf32>
    %136 = arith.mulf %134, %135 : vector<1x256xf32>
    %137 = arith.mulf %131, %131 : vector<1x256xf32>
    %138 = arith.subf %136, %137 : vector<1x256xf32>
    %cst_56 = arith.constant 0.000000e+00 : f32
    %139 = vector.broadcast %cst_56 : f32 to vector<1x256xf32>
    %140 = arith.maximumf %138, %139 : vector<1x256xf32>
    %141 = vector.broadcast %131 : vector<1x256xf32> to vector<8x256xf32>
    %142 = arith.subf %127, %141 : vector<8x256xf32>
    %cst_57 = arith.constant 9.99999974E-6 : f32
    %143 = vector.broadcast %cst_57 : f32 to vector<1x256xf32>
    %144 = arith.addf %140, %143 : vector<1x256xf32>
    %145 = math.rsqrt %144 : vector<1x256xf32>
    %146 = vector.broadcast %145 : vector<1x256xf32> to vector<8x256xf32>
    %147 = arith.mulf %142, %146 : vector<8x256xf32>
    %148 = vector.extract_strided_slice %121 {offsets = [1, 0], sizes = [1, 256], strides = [1, 1]} : vector<8x256xf32> to vector<1x256xf32>
    %149 = vector.broadcast %148 : vector<1x256xf32> to vector<8x256xf32>
    %150 = arith.mulf %147, %149 : vector<8x256xf32>
    %151 = vector.extract_strided_slice %121 {offsets = [2, 0], sizes = [1, 256], strides = [1, 1]} : vector<8x256xf32> to vector<1x256xf32>
    %152 = vector.broadcast %151 : vector<1x256xf32> to vector<8x256xf32>
    %153 = arith.addf %150, %152 : vector<8x256xf32>
    %154 = arith.truncf %153 : vector<8x256xf32> to vector<8x256xbf16>
    %c0_58 = arith.constant 0 : index
    %c0_59 = arith.constant 0 : index
    %155 = vector.load %arg9[%c0_58, %c0_59] : memref<256x128xbf16, #tpu.memory_space<vmem>>, vector<256x128xbf16>
    %cst_60 = arith.constant dense<0.000000e+00> : vector<8x128xf32>
    %156 = tpu.matmul %154, %155, %cst_60 {dimension_numbers = #tpu.dot_dimension_numbers<[1], [0], [0], [1], [0, 0, 1, 1], [], []>} : vector<8x256xbf16>, vector<256x128xbf16>, vector<8x128xf32> -> vector<8x128xf32>
    %c0_61 = arith.constant 0 : index
    %c0_62 = arith.constant 0 : index
    %157 = vector.load %arg10[%c0_61, %c0_62] : memref<8x256xf32, #tpu.memory_space<vmem>>, vector<8x128xf32>
    tpu.vector_store %arg10[%c0_61, %c0_62], %80 {strides = array<i32>} : memref<8x256xf32, #tpu.memory_space<vmem>>, vector<8x128xf32>,
    %c0_63 = arith.constant 0 : index
    %c128 = arith.constant 128 : index
    %158 = vector.load %arg10[%c0_63, %c128] : memref<8x256xf32, #tpu.memory_space<vmem>>, vector<8x128xf32>
    tpu.vector_store %arg10[%c0_63, %c128], %156 {strides = array<i32>} : memref<8x256xf32, #tpu.memory_space<vmem>>, vector<8x128xf32>,
    return
  }
}

</mosaic_0001>

<llo_original>
// kernel: forward.1
$region0: #{forward.1}
  #allocation0 [shape = 'u32[]', space=smem, size = 0x4, offset = 0x4, fixed_abs, tag = 'smem constant byte address 0x4 - core index']
  #allocation1 [shape = 'u32[144,128]{1,0:T(1,128)}', space=vmem, size = 0x12000, scoped, tag = 'internal scratch']
  %s0 = inlined_call_operand.hbm [shape: f32[8,16], index: 0, kind: input, shape index: {}]
  %s1 = inlined_call_operand.hbm [shape: bf16[16,128], index: 1, kind: input, shape index: {}]
  %s2 = inlined_call_operand.hbm [shape: bf16[1,128,128], index: 2, kind: input, shape index: {}]
  %s3 = inlined_call_operand.hbm [shape: f32[2,8,128], index: 3, kind: input, shape index: {}]
  %s4 = inlined_call_operand.hbm [shape: bf16[128,128], index: 4, kind: input, shape index: {}]
  %s5 = inlined_call_operand.vmem [shape: f32[8,128], index: 5, kind: input, shape index: {}]
  %s6 = inlined_call_operand.hbm [shape: bf16[128,256], index: 6, kind: input, shape index: {}]
  %s7 = inlined_call_operand.hbm [shape: bf16[1,256,256], index: 7, kind: input, shape index: {}]
  %s8 = inlined_call_operand.hbm [shape: f32[2,8,256], index: 8, kind: input, shape index: {}]
  %s9 = inlined_call_operand.hbm [shape: bf16[256,128], index: 9, kind: input, shape index: {}]
  %s10 = inlined_call_operand.vmem [shape: f32[8,256], index: 10, kind: output, shape index: {}]
  %s11 = sld [smem:[#allocation0]]
  $region86: #{forward.1} parent=0
    _
  %s13 = ssub.s32 1, %s11
  %s14 = scalar_select 0, %s13, %s11
  $region1: #{forward.1} parent=0
    #allocation2 [shape = 'u8[4096]{0}', space=vmem, size = 0x1000, scoped, tag = 'input window, operand 0, single buffered']
    #allocation3 [shape = 's32[1]{0}', space=sflag, size = 0x4, scoped, tag = 'scoped memory for forward.1']
    #allocation4 [shape = 'u8[4096]{0}', space=vmem, size = 0x1000, scoped, tag = 'input window, operand 1, single buffered']
    #allocation5 [shape = 's32[1]{0}', space=sflag, size = 0x4, scoped, tag = 'scoped memory for forward.1']
    #allocation6 [shape = 'u8[32768]{0}', space=vmem, size = 0x8000, scoped, tag = 'input window, operand 2, single buffered']
    #allocation7 [shape = 'u8[8192]{0}', space=vmem, size = 0x2000, scoped, tag = 'input window, operand 3, single buffered']
    #allocation8 [shape = 's32[1]{0}', space=sflag, size = 0x4, scoped, tag = 'scoped memory for forward.1']
    #allocation9 [shape = 'u8[32768]{0}', space=vmem, size = 0x8000, scoped, tag = 'input window, operand 4, single buffered']
    #allocation10 [shape = 'u8[65536]{0}', space=vmem, size = 0x10000, scoped, tag = 'input window, operand 6, single buffered']
    #allocation11 [shape = 's32[1]{0}', space=sflag, size = 0x4, scoped, tag = 'scoped memory for forward.1']
    #allocation12 [shape = 'u8[131072]{0}', space=vmem, size = 0x20000, scoped, tag = 'input window, operand 7, single buffered']
    #allocation13 [shape = 'u8[16384]{0}', space=vmem, size = 0x4000, scoped, tag = 'input window, operand 8, single buffered']
    #allocation14 [shape = 's32[1]{0}', space=sflag, size = 0x4, scoped, tag = 'scoped memory for forward.1']
    #allocation15 [shape = 'u8[65536]{0}', space=vmem, size = 0x10000, scoped, tag = 'input window, operand 9, single buffered']
    %15 = vsyncpa [#allocation3], 0
    %16 = vsyncpa [#allocation5], 0
    %17 = vsyncpa [#allocation8], 0
    %18 = vsyncpa [#allocation11], 0
    %19 = vsyncpa [#allocation14], 0
    // Predicated region
    $region2: #{forward.1} parent=1 // pred_check
      _
    $region3: #{forward.1} parent=1 // pred_check_branch
      %21 = sbr.rel (0) target = $region5
    $region4: #{forward.1} parent=1 // pred_region
      %s23 = ssub.s32 128, 128
      %24 = vsyncadd [#allocation3], %s23
      %s26 = sshll.u32 [#allocation2], 4
      %s27 = int_to_ptr.vmem [resolvable:$true] %s26
      %29 = dma.hbm_to_vmem [thread:$0]  %s0, 128, %s27, [#allocation3]
    $region5: #{forward.1} parent=1 // pred_fallthru
      _
    // Predicated region
    $region6: #{forward.1} parent=1 // pred_check
      _
    $region7: #{forward.1} parent=1 // pred_check_branch
      %31 = sbr.rel (0) target = $region9
    $region8: #{forward.1} parent=1 // pred_region
      %s33 = ssub.s32 128, 128
      %34 = vsyncadd [#allocation5], %s33
      %s35 = sshll.u32 [#allocation4], 4
      %s36 = int_to_ptr.vmem [resolvable:$true] %s35
      %41 = dma.hbm_to_vmem [thread:$0]  %s1, 128, %s36, [#allocation5], 64, 64, 4
    $region9: #{forward.1} parent=1 // pred_fallthru
      _
    // Predicated region
    $region10: #{forward.1} parent=1 // pred_check
      _
    $region11: #{forward.1} parent=1 // pred_check_branch
      %43 = sbr.rel (0) target = $region13
    $region12: #{forward.1} parent=1 // pred_region
      %s45 = ssub.s32 1024, 1024
      %46 = vsyncadd [#allocation5], %s45
      %s47 = sshll.u32 [#allocation6], 4
      %s48 = int_to_ptr.vmem [resolvable:$true] %s47
      %53 = dma.hbm_to_vmem [thread:$0]  %s2, 1024, %s48, [#allocation5], 64, 64, 4
    $region13: #{forward.1} parent=1 // pred_fallthru
      _
    // Predicated region
    $region14: #{forward.1} parent=1 // pred_check
      _
    $region15: #{forward.1} parent=1 // pred_check_branch
      %55 = sbr.rel (0) target = $region17
    $region16: #{forward.1} parent=1 // pred_region
      %s57 = ssub.s32 256, 256
      %58 = vsyncadd [#allocation8], %s57
      %s59 = sshll.u32 [#allocation7], 4
      %s60 = int_to_ptr.vmem [resolvable:$true] %s59
      %65 = dma.hbm_to_vmem [thread:$0]  %s3, 256, %s60, [#allocation8], 128, 128, 8
    $region17: #{forward.1} parent=1 // pred_fallthru
      _
    // Predicated region
    $region18: #{forward.1} parent=1 // pred_check
      _
    $region19: #{forward.1} parent=1 // pred_check_branch
      %67 = sbr.rel (0) target = $region21
    $region20: #{forward.1} parent=1 // pred_region
      %s69 = ssub.s32 1024, 1024
      %70 = vsyncadd [#allocation8], %s69
      %s71 = sshll.u32 [#allocation9], 4
      %s72 = int_to_ptr.vmem [resolvable:$true] %s71
      %77 = dma.hbm_to_vmem [thread:$0]  %s4, 1024, %s72, [#allocation8], 64, 64, 4
    $region21: #{forward.1} parent=1 // pred_fallthru
      _
    // Predicated region
    $region22: #{forward.1} parent=1 // pred_check
      _
    $region23: #{forward.1} parent=1 // pred_check_branch
      %79 = sbr.rel (0) target = $region25
    $region24: #{forward.1} parent=1 // pred_region
      _
    $region25: #{forward.1} parent=1 // pred_fallthru
      _
    // Predicated region
    $region26: #{forward.1} parent=1 // pred_check
      _
    $region27: #{forward.1} parent=1 // pred_check_branch
      %81 = sbr.rel (0) target = $region29
    $region28: #{forward.1} parent=1 // pred_region
      %s83 = ssub.s32 2048, 2048
      %84 = vsyncadd [#allocation11], %s83
      %s85 = sshll.u32 [#allocation10], 4
      %s86 = int_to_ptr.vmem [resolvable:$true] %s85
      %91 = dma.hbm_to_vmem [thread:$0]  %s6, 2048, %s86, [#allocation11], 128, 128, 8
    $region29: #{forward.1} parent=1 // pred_fallthru
      _
    // Predicated region
    $region30: #{forward.1} parent=1 // pred_check
      _
    $region31: #{forward.1} parent=1 // pred_check_branch
      %93 = sbr.rel (0) target = $region33
    $region32: #{forward.1} parent=1 // pred_region
      %s95 = ssub.s32 4096, 4096
      %96 = vsyncadd [#allocation11], %s95
      %s97 = sshll.u32 [#allocation12], 4
      %s98 = int_to_ptr.vmem [resolvable:$true] %s97
      %103 = dma.hbm_to_vmem [thread:$0]  %s7, 4096, %s98, [#allocation11], 128, 128, 8
    $region33: #{forward.1} parent=1 // pred_fallthru
      _
    // Predicated region
    $region34: #{forward.1} parent=1 // pred_check
      _
    $region35: #{forward.1} parent=1 // pred_check_branch
      %105 = sbr.rel (0) target = $region37
    $region36: #{forward.1} parent=1 // pred_region
      %s107 = ssub.s32 512, 512
      %108 = vsyncadd [#allocation14], %s107
      %s109 = sshll.u32 [#allocation13], 4
      %s110 = int_to_ptr.vmem [resolvable:$true] %s109
      %115 = dma.hbm_to_vmem [thread:$0]  %s8, 512, %s110, [#allocation14], 256, 256, 16
    $region37: #{forward.1} parent=1 // pred_fallthru
      _
    // Predicated region
    $region38: #{forward.1} parent=1 // pred_check
      _
    $region39: #{forward.1} parent=1 // pred_check_branch
      %117 = sbr.rel (0) target = $region41
    $region40: #{forward.1} parent=1 // pred_region
      %s119 = ssub.s32 2048, 2048
      %120 = vsyncadd [#allocation14], %s119
      %s121 = sshll.u32 [#allocation15], 4
      %s122 = int_to_ptr.vmem [resolvable:$true] %s121
      %127 = dma.hbm_to_vmem [thread:$0]  %s9, 2048, %s122, [#allocation14], 64, 64, 4
    $region41: #{forward.1} parent=1 // pred_fallthru
      _
    // Predicated region
    $region42: #{forward.1} parent=1 // pred_check
      _
    $region43: #{forward.1} parent=1 // pred_check_branch
      %129 = sbr.rel (0) target = $region45
    $region44: #{forward.1} parent=1 // pred_region
      %130 = dma.done [#allocation3], 128
    $region45: #{forward.1} parent=1 // pred_fallthru
      _
    // Predicated region
    $region46: #{forward.1} parent=1 // pred_check
      _
    $region47: #{forward.1} parent=1 // pred_check_branch
      %132 = sbr.rel (0) target = $region49
    $region48: #{forward.1} parent=1 // pred_region
      %133 = dma.done [#allocation5], 128
    $region49: #{forward.1} parent=1 // pred_fallthru
      _
    // Predicated region
    $region50: #{forward.1} parent=1 // pred_check
      _
    $region51: #{forward.1} parent=1 // pred_check_branch
      %135 = sbr.rel (0) target = $region53
    $region52: #{forward.1} parent=1 // pred_region
      %136 = dma.done [#allocation5], 1024
    $region53: #{forward.1} parent=1 // pred_fallthru
      _
    // Predicated region
    $region54: #{forward.1} parent=1 // pred_check
      _
    $region55: #{forward.1} parent=1 // pred_check_branch
      %138 = sbr.rel (0) target = $region57
    $region56: #{forward.1} parent=1 // pred_region
      %139 = dma.done [#allocation8], 256
    $region57: #{forward.1} parent=1 // pred_fallthru
      _
    // Predicated region
    $region58: #{forward.1} parent=1 // pred_check
      _
    $region59: #{forward.1} parent=1 // pred_check_branch
      %141 = sbr.rel (0) target = $region61
    $region60: #{forward.1} parent=1 // pred_region
      %142 = dma.done [#allocation8], 1024
    $region61: #{forward.1} parent=1 // pred_fallthru
      _
    // Predicated region
    $region62: #{forward.1} parent=1 // pred_check
      _
    $region63: #{forward.1} parent=1 // pred_check_branch
      %144 = sbr.rel (0) target = $region65
    $region64: #{forward.1} parent=1 // pred_region
      %145 = dma.done [#allocation11], 2048
    $region65: #{forward.1} parent=1 // pred_fallthru
      _
    // Predicated region
    $region66: #{forward.1} parent=1 // pred_check
      _
    $region67: #{forward.1} parent=1 // pred_check_branch
      %147 = sbr.rel (0) target = $region69
    $region68: #{forward.1} parent=1 // pred_region
      %148 = dma.done [#allocation11], 4096
    $region69: #{forward.1} parent=1 // pred_fallthru
      _
    // Predicated region
    $region70: #{forward.1} parent=1 // pred_check
      _
    $region71: #{forward.1} parent=1 // pred_check_branch
      %150 = sbr.rel (0) target = $region73
    $region72: #{forward.1} parent=1 // pred_region
      %151 = dma.done [#allocation14], 512
    $region73: #{forward.1} parent=1 // pred_fallthru
      _
    // Predicated region
    $region74: #{forward.1} parent=1 // pred_check
      _
    $region75: #{forward.1} parent=1 // pred_check_branch
      %153 = sbr.rel (0) target = $region77
    $region76: #{forward.1} parent=1 // pred_region
      %154 = dma.done [#allocation14], 2048
    $region77: #{forward.1} parent=1 // pred_fallthru
      _
    %v156 = vld [vmem:[#allocation2] sm:$0xff]
    %v157 = vpack.c.bf16 %v156, %v156
    %v158 = vld [vmem:[#allocation4] sm:$0xf]
    %v159 = vld [vmem:[#allocation4 + $0x4] sm:$0xf]
    %v160 = vld [vmem:[#allocation7] sm:$0xff]
    %v161 = vlaneseq
    %v162 = vshrl.u32 %v161, 7
    %v163 = vsub.s32 0, %v162
    %v164 = vrot.slane %v160, %v163
    %v167 = vunpack.c.l.b16 %v158
    %v168 = vunpack.c.l.b16 %v159
    %v169 = vpack.c.b16 %v168, %v167
    %vm171 = vcmask 130048
    %v173 = vsel %vm171, %v157, 0
    %175 = vmatprep.subr.bf16.mxu0 0
    %176 = vmatpush1.bf16.msra.mxu0 %v169
    %177 = vmatprep.subr.bf16.mxu0 0
    %178 = vmatpush1.bf16.msra.mxu0 0
    %179 = vmatprep.subr.bf16.mxu0 0
    %180 = vmatpush1.bf16.msra.mxu0 0
    %181 = vmatprep.subr.bf16.mxu0 0
    %182 = vmatpush1.bf16.msra.mxu0 0
    %183 = vmatprep.subr.bf16.mxu0 0
    %184 = vmatpush1.bf16.msra.mxu0 0
    %185 = vmatprep.subr.bf16.mxu0 0
    %186 = vmatpush1.bf16.msra.mxu0 0
    %187 = vmatprep.subr.bf16.mxu0 0
    %188 = vmatpush1.bf16.msra.mxu0 0
    %189 = vmatprep.subr.bf16.mxu0 0
    %190 = vmatpush1.bf16.msra.mxu0 0
    %191 = vmatprep.subr.bf16.mxu0 0
    %192 = vmatpush1.bf16.msra.mxu0 0
    %193 = vmatprep.subr.bf16.mxu0 0
    %194 = vmatpush1.bf16.msra.mxu0 0
    %195 = vmatprep.subr.bf16.mxu0 0
    %196 = vmatpush1.bf16.msra.mxu0 0
    %197 = vmatprep.subr.bf16.mxu0 0
    %198 = vmatpush1.bf16.msra.mxu0 0
    %199 = vmatprep.subr.bf16.mxu0 0
    %200 = vmatpush1.bf16.msra.mxu0 0
    %201 = vmatprep.subr.bf16.mxu0 0
    %202 = vmatpush1.bf16.msra.mxu0 0
    %203 = vmatprep.subr.bf16.mxu0 0
    %204 = vmatpush1.bf16.msra.mxu0 0
    %205 = vmatprep.subr.bf16.mxu0 0
    %206 = vmatpush1.bf16.msra.mxu0 0
    %207 = vmatprep.mubr.bf16.mxu0 0
    %208 = vmatmul.mubr.bf16.gmra.mrb[0].mxu0 %v173
    %v209 = vpop.f32.mrb[0].mxu0
    %v210 = vadd.f32 %v164, %v209
    %v211 = vpop.f32.mrb[0].mxu0
    %v212 = vpop.f32.mrb[0].mxu0
    %v213 = vpop.f32.mrb[0].mxu0
    %214 = vdwg.mxu0
    %v215 = vmax.f32 %v210, 0.0
    %v216 = vrot.slane %v215, 4
    %v217 = vadd.f32 %v215, %v216
    %v218 = vrot.slane %v217, 2
    %v219 = vadd.f32 %v217, %v218
    %v220 = vrot.slane %v219, 1
    %v221 = vadd.f32 %v219, %v220
    %v222 = vmul.f32 %v221, 0.125
    %v223 = vmul.f32 %v215, %v215
    %v224 = vrot.slane %v223, 4
    %v225 = vadd.f32 %v223, %v224
    %v226 = vrot.slane %v225, 2
    %v227 = vadd.f32 %v225, %v226
    %v228 = vrot.slane %v227, 1
    %v229 = vadd.f32 %v227, %v228
    %v230 = vmul.f32 %v229, 0.125
    %v231 = vmul.f32 %v222, %v222
    %v232 = vsub.f32 %v230, %v231
    %v233 = vmax.f32 %v232, 0.0
    %v234 = vsub.f32 %v215, %v222
    %v235 = vadd.f32 %v233, 1e-05
    %v236 = vrsqrt.pop %v235
    %v237 = vmul.f32 %v234, %v236
    %v238 = vlaneseq
    %v239 = vshrl.u32 %v238, 7
    %v240 = vsub.s32 1, %v239
    %v241 = vrot.slane %v160, %v240
    %v242 = vmul.f32 %v237, %v241
    %v243 = vlaneseq
    %v244 = vshrl.u32 %v243, 7
    %v245 = vsub.s32 2, %v244
    %v246 = vrot.slane %v160, %v245
    %v247 = vadd.f32 %v242, %v246
    %v248 = vpack.c.bf16 %v247, %v247
    %v249 = vld [vmem:[#allocation6] sm:$0xf]
    %v250 = vld [vmem:[#allocation6 + $0x4] sm:$0xf]
    %v251 = vld [vmem:[#allocation6 + $0x8] sm:$0xf]
    %v252 = vld [vmem:[#allocation6 + $0xc] sm:$0xf]
    %v253 = vld [vmem:[#allocation6 + $0x10] sm:$0xf]
    %v254 = vld [vmem:[#allocation6 + $0x14] sm:$0xf]
    %v255 = vld [vmem:[#allocation6 + $0x18] sm:$0xf]
    %v256 = vld [vmem:[#allocation6 + $0x1c] sm:$0xf]
    %v257 = vld [vmem:[#allocation6 + $0x20] sm:$0xf]
    %v258 = vld [vmem:[#allocation6 + $0x24] sm:$0xf]
    %v259 = vld [vmem:[#allocation6 + $0x28] sm:$0xf]
    %v260 = vld [vmem:[#allocation6 + $0x2c] sm:$0xf]
    %v261 = vld [vmem:[#allocation6 + $0x30] sm:$0xf]
    %v262 = vld [vmem:[#allocation6 + $0x34] sm:$0xf]
    %v263 = vld [vmem:[#allocation6 + $0x38] sm:$0xf]
    %v264 = vld [vmem:[#allocation6 + $0x3c] sm:$0xf]
    %s265 = scalar_lea.vmem [#allocation7], 8
    %v266 = vld [vmem:[%s265] sm:$0xff]
    %v267 = vlaneseq
    %v268 = vshrl.u32 %v267, 7
    %v269 = vsub.s32 0, %v268
    %v270 = vrot.slane %v266, %v269
    %v287 = vunpack.c.l.b16 %v249
    %v288 = vunpack.c.l.b16 %v250
    %v289 = vunpack.c.l.b16 %v251
    %v290 = vunpack.c.l.b16 %v252
    %v291 = vunpack.c.l.b16 %v253
    %v292 = vunpack.c.l.b16 %v254
    %v293 = vunpack.c.l.b16 %v255
    %v294 = vunpack.c.l.b16 %v256
    %v295 = vunpack.c.l.b16 %v257
    %v296 = vunpack.c.l.b16 %v258
    %v297 = vunpack.c.l.b16 %v259
    %v298 = vunpack.c.l.b16 %v260
    %v299 = vunpack.c.l.b16 %v261
    %v300 = vunpack.c.l.b16 %v262
    %v301 = vunpack.c.l.b16 %v263
    %v302 = vunpack.c.l.b16 %v264
    %v303 = vpack.c.b16 %v288, %v287
    %v304 = vpack.c.b16 %v290, %v289
    %v305 = vpack.c.b16 %v292, %v291
    %v306 = vpack.c.b16 %v294, %v293
    %v307 = vpack.c.b16 %v296, %v295
    %v308 = vpack.c.b16 %v298, %v297
    %v309 = vpack.c.b16 %v300, %v299
    %v310 = vpack.c.b16 %v302, %v301
    %319 = vmatprep.subr.bf16.mxu0 0
    %320 = vmatpush1.bf16.msra.mxu0 %v303
    %321 = vmatprep.subr.bf16.mxu0 0
    %322 = vmatpush1.bf16.msra.mxu0 %v304
    %323 = vmatprep.subr.bf16.mxu0 0
    %324 = vmatpush1.bf16.msra.mxu0 %v305
    %325 = vmatprep.subr.bf16.mxu0 0
    %326 = vmatpush1.bf16.msra.mxu0 %v306
    %327 = vmatprep.subr.bf16.mxu0 0
    %328 = vmatpush1.bf16.msra.mxu0 %v307
    %329 = vmatprep.subr.bf16.mxu0 0
    %330 = vmatpush1.bf16.msra.mxu0 %v308
    %331 = vmatprep.subr.bf16.mxu0 0
    %332 = vmatpush1.bf16.msra.mxu0 %v309
    %333 = vmatprep.subr.bf16.mxu0 0
    %334 = vmatpush1.bf16.msra.mxu0 %v310
    %335 = vmatprep.subr.bf16.mxu0 0
    %336 = vmatpush1.bf16.msra.mxu0 0
    %337 = vmatprep.subr.bf16.mxu0 0
    %338 = vmatpush1.bf16.msra.mxu0 0
    %339 = vmatprep.subr.bf16.mxu0 0
    %340 = vmatpush1.bf16.msra.mxu0 0
    %341 = vmatprep.subr.bf16.mxu0 0
    %342 = vmatpush1.bf16.msra.mxu0 0
    %343 = vmatprep.subr.bf16.mxu0 0
    %344 = vmatpush1.bf16.msra.mxu0 0
    %345 = vmatprep.subr.bf16.mxu0 0
    %346 = vmatpush1.bf16.msra.mxu0 0
    %347 = vmatprep.subr.bf16.mxu0 0
    %348 = vmatpush1.bf16.msra.mxu0 0
    %349 = vmatprep.subr.bf16.mxu0 0
    %350 = vmatpush1.bf16.msra.mxu0 0
    %351 = vmatprep.mubr.bf16.mxu0 0
    %352 = vmatmul.mubr.bf16.gmra.mrb[0].mxu0 %v248
    %v353 = vpop.f32.mrb[0].mxu0
    %v354 = vadd.f32 %v270, %v353
    %v355 = vpop.f32.mrb[0].mxu0
    %v356 = vpop.f32.mrb[0].mxu0
    %v357 = vpop.f32.mrb[0].mxu0
    %358 = vdwg.mxu0
    %v359 = vmax.f32 %v354, 0.0
    %v360 = vrot.slane %v359, 4
    %v361 = vadd.f32 %v359, %v360
    %v362 = vrot.slane %v361, 2
    %v363 = vadd.f32 %v361, %v362
    %v364 = vrot.slane %v363, 1
    %v365 = vadd.f32 %v363, %v364
    %v366 = vmul.f32 %v365, 0.125
    %v367 = vmul.f32 %v359, %v359
    %v368 = vrot.slane %v367, 4
    %v369 = vadd.f32 %v367, %v368
    %v370 = vrot.slane %v369, 2
    %v371 = vadd.f32 %v369, %v370
    %v372 = vrot.slane %v371, 1
    %v373 = vadd.f32 %v371, %v372
    %v374 = vmul.f32 %v373, 0.125
    %v375 = vmul.f32 %v366, %v366
    %v376 = vsub.f32 %v374, %v375
    %v377 = vmax.f32 %v376, 0.0
    %v378 = vsub.f32 %v359, %v366
    %v379 = vadd.f32 %v377, 1e-05
    %v380 = vrsqrt.pop %v379
    %v381 = vmul.f32 %v378, %v380
    %v382 = vlaneseq
    %v383 = vshrl.u32 %v382, 7
    %v384 = vsub.s32 1, %v383
    %v385 = vrot.slane %v266, %v384
    %v386 = vmul.f32 %v381, %v385
    %v387 = vlaneseq
    %v388 = vshrl.u32 %v387, 7
    %v389 = vsub.s32 2, %v388
    %v390 = vrot.slane %v266, %v389
    %v391 = vadd.f32 %v386, %v390
    %v392 = vadd.f32 %v247, %v391
    %v393 = vpack.c.bf16 %v392, %v392
    %v394 = vld [vmem:[#allocation9] sm:$0xf]
    %v395 = vld [vmem:[#allocation9 + $0x4] sm:$0xf]
    %v396 = vld [vmem:[#allocation9 + $0x8] sm:$0xf]
    %v397 = vld [vmem:[#allocation9 + $0xc] sm:$0xf]
    %v398 = vld [vmem:[#allocation9 + $0x10] sm:$0xf]
    %v399 = vld [vmem:[#allocation9 + $0x14] sm:$0xf]
    %v400 = vld [vmem:[#allocation9 + $0x18] sm:$0xf]
    %v401 = vld [vmem:[#allocation9 + $0x1c] sm:$0xf]
    %v402 = vld [vmem:[#allocation9 + $0x20] sm:$0xf]
    %v403 = vld [vmem:[#allocation9 + $0x24] sm:$0xf]
    %v404 = vld [vmem:[#allocation9 + $0x28] sm:$0xf]
    %v405 = vld [vmem:[#allocation9 + $0x2c] sm:$0xf]
    %v406 = vld [vmem:[#allocation9 + $0x30] sm:$0xf]
    %v407 = vld [vmem:[#allocation9 + $0x34] sm:$0xf]
    %v408 = vld [vmem:[#allocation9 + $0x38] sm:$0xf]
    %v409 = vld [vmem:[#allocation9 + $0x3c] sm:$0xf]
    %v410 = vld [vmem:[%s5] sm:$0x1]
    %v411 = vlaneseq
    %v412 = vshrl.u32 %v411, 7
    %v413 = vsub.s32 0, %v412
    %v414 = vrot.slane %v410, %v413
    %v431 = vunpack.c.l.b16 %v394
    %v432 = vunpack.c.l.b16 %v395
    %v433 = vunpack.c.l.b16 %v396
    %v434 = vunpack.c.l.b16 %v397
    %v435 = vunpack.c.l.b16 %v398
    %v436 = vunpack.c.l.b16 %v399
    %v437 = vunpack.c.l.b16 %v400
    %v438 = vunpack.c.l.b16 %v401
    %v439 = vunpack.c.l.b16 %v402
    %v440 = vunpack.c.l.b16 %v403
    %v441 = vunpack.c.l.b16 %v404
    %v442 = vunpack.c.l.b16 %v405
    %v443 = vunpack.c.l.b16 %v406
    %v444 = vunpack.c.l.b16 %v407
    %v445 = vunpack.c.l.b16 %v408
    %v446 = vunpack.c.l.b16 %v409
    %v447 = vpack.c.b16 %v432, %v431
    %v448 = vpack.c.b16 %v434, %v433
    %v449 = vpack.c.b16 %v436, %v435
    %v450 = vpack.c.b16 %v438, %v437
    %v451 = vpack.c.b16 %v440, %v439
    %v452 = vpack.c.b16 %v442, %v441
    %v453 = vpack.c.b16 %v444, %v443
    %v454 = vpack.c.b16 %v446, %v445
    %463 = vmatprep.subr.bf16.mxu0 0
    %464 = vmatpush1.bf16.msra.mxu0 %v447
    %465 = vmatprep.subr.bf16.mxu0 0
    %466 = vmatpush1.bf16.msra.mxu0 %v448
    %467 = vmatprep.subr.bf16.mxu0 0
    %468 = vmatpush1.bf16.msra.mxu0 %v449
    %469 = vmatprep.subr.bf16.mxu0 0
    %470 = vmatpush1.bf16.msra.mxu0 %v450
    %471 = vmatprep.subr.bf16.mxu0 0
    %472 = vmatpush1.bf16.msra.mxu0 %v451
    %473 = vmatprep.subr.bf16.mxu0 0
    %474 = vmatpush1.bf16.msra.mxu0 %v452
    %475 = vmatprep.subr.bf16.mxu0 0
    %476 = vmatpush1.bf16.msra.mxu0 %v453
    %477 = vmatprep.subr.bf16.mxu0 0
    %478 = vmatpush1.bf16.msra.mxu0 %v454
    %479 = vmatprep.subr.bf16.mxu0 0
    %480 = vmatpush1.bf16.msra.mxu0 0
    %481 = vmatprep.subr.bf16.mxu0 0
    %482 = vmatpush1.bf16.msra.mxu0 0
    %483 = vmatprep.subr.bf16.mxu0 0
    %484 = vmatpush1.bf16.msra.mxu0 0
    %485 = vmatprep.subr.bf16.mxu0 0
    %486 = vmatpush1.bf16.msra.mxu0 0
    %487 = vmatprep.subr.bf16.mxu0 0
    %488 = vmatpush1.bf16.msra.mxu0 0
    %489 = vmatprep.subr.bf16.mxu0 0
    %490 = vmatpush1.bf16.msra.mxu0 0
    %491 = vmatprep.subr.bf16.mxu0 0
    %492 = vmatpush1.bf16.msra.mxu0 0
    %493 = vmatprep.subr.bf16.mxu0 0
    %494 = vmatpush1.bf16.msra.mxu0 0
    %495 = vmatprep.mubr.bf16.mxu0 0
    %496 = vmatmul.mubr.bf16.gmra.mrb[0].mxu0 %v393
    %v497 = vpop.f32.mrb[0].mxu0
    %v498 = vadd.f32 %v414, %v497
    %v499 = vpop.f32.mrb[0].mxu0
    %v500 = vpop.f32.mrb[0].mxu0
    %v501 = vpop.f32.mrb[0].mxu0
    %502 = vdwg.mxu0
    %v503 = vpack.c.bf16 %v498, %v498
    %v504 = vld [vmem:[#allocation10] sm:$0xff]
    %v505 = vld [vmem:[#allocation10 + $0x8] sm:$0xff]
    %v506 = vld [vmem:[#allocation10 + $0x10] sm:$0xff]
    %v507 = vld [vmem:[#allocation10 + $0x18] sm:$0xff]
    %v508 = vld [vmem:[#allocation10 + $0x20] sm:$0xff]
    %v509 = vld [vmem:[#allocation10 + $0x28] sm:$0xff]
    %v510 = vld [vmem:[#allocation10 + $0x30] sm:$0xff]
    %v511 = vld [vmem:[#allocation10 + $0x38] sm:$0xff]
    %v512 = vld [vmem:[#allocation10 + $0x40] sm:$0xff]
    %v513 = vld [vmem:[#allocation10 + $0x48] sm:$0xff]
    %v514 = vld [vmem:[#allocation10 + $0x50] sm:$0xff]
    %v515 = vld [vmem:[#allocation10 + $0x58] sm:$0xff]
    %v516 = vld [vmem:[#allocation10 + $0x60] sm:$0xff]
    %v517 = vld [vmem:[#allocation10 + $0x68] sm:$0xff]
    %v518 = vld [vmem:[#allocation10 + $0x70] sm:$0xff]
    %v519 = vld [vmem:[#allocation10 + $0x78] sm:$0xff]
    %v520 = vld [vmem:[#allocation13] sm:$0xff]
    %v521 = vld [vmem:[#allocation13 + $0x8] sm:$0xff]
    %v522 = vlaneseq
    %v523 = vshrl.u32 %v522, 7
    %v524 = vsub.s32 0, %v523
    %v525 = vrot.slane %v520, %v524
    %v526 = vlaneseq
    %v527 = vshrl.u32 %v526, 7
    %v528 = vsub.s32 0, %v527
    %v529 = vrot.slane %v521, %v528
    %v546 = vunpack.c.l.b16 %v504
    %v547 = vunpack.c.h.b16 %v504
    %v548 = vunpack.c.l.b16 %v505
    %v549 = vunpack.c.h.b16 %v505
    %v550 = vunpack.c.l.b16 %v506
    %v551 = vunpack.c.h.b16 %v506
    %v552 = vunpack.c.l.b16 %v507
    %v553 = vunpack.c.h.b16 %v507
    %v554 = vunpack.c.l.b16 %v508
    %v555 = vunpack.c.h.b16 %v508
    %v556 = vunpack.c.l.b16 %v509
    %v557 = vunpack.c.h.b16 %v509
    %v558 = vunpack.c.l.b16 %v510
    %v559 = vunpack.c.h.b16 %v510
    %v560 = vunpack.c.l.b16 %v511
    %v561 = vunpack.c.h.b16 %v511
    %v562 = vunpack.c.l.b16 %v512
    %v563 = vunpack.c.h.b16 %v512
    %v564 = vunpack.c.l.b16 %v513
    %v565 = vunpack.c.h.b16 %v513
    %v566 = vunpack.c.l.b16 %v514
    %v567 = vunpack.c.h.b16 %v514
    %v568 = vunpack.c.l.b16 %v515
    %v569 = vunpack.c.h.b16 %v515
    %v570 = vunpack.c.l.b16 %v516
    %v571 = vunpack.c.h.b16 %v516
    %v572 = vunpack.c.l.b16 %v517
    %v573 = vunpack.c.h.b16 %v517
    %v574 = vunpack.c.l.b16 %v518
    %v575 = vunpack.c.h.b16 %v518
    %v576 = vunpack.c.l.b16 %v519
    %v577 = vunpack.c.h.b16 %v519
    %v578 = vpack.c.b16 %v548, %v546
    %v579 = vpack.c.b16 %v549, %v547
    %v580 = vpack.c.b16 %v552, %v550
    %v581 = vpack.c.b16 %v553, %v551
    %v582 = vpack.c.b16 %v556, %v554
    %v583 = vpack.c.b16 %v557, %v555
    %v584 = vpack.c.b16 %v560, %v558
    %v585 = vpack.c.b16 %v561, %v559
    %v586 = vpack.c.b16 %v564, %v562
    %v587 = vpack.c.b16 %v565, %v563
    %v588 = vpack.c.b16 %v568, %v566
    %v589 = vpack.c.b16 %v569, %v567
    %v590 = vpack.c.b16 %v572, %v570
    %v591 = vpack.c.b16 %v573, %v571
    %v592 = vpack.c.b16 %v576, %v574
    %v593 = vpack.c.b16 %v577, %v575
    %610 = vmatprep.subr.bf16.mxu0 %v579
    %611 = vmatpush1.bf16.msra.mxu0 %v578
    %612 = vmatprep.subr.bf16.mxu0 %v581
    %613 = vmatpush1.bf16.msra.mxu0 %v580
    %614 = vmatprep.subr.bf16.mxu0 %v583
    %615 = vmatpush1.bf16.msra.mxu0 %v582
    %616 = vmatprep.subr.bf16.mxu0 %v585
    %617 = vmatpush1.bf16.msra.mxu0 %v584
    %618 = vmatprep.subr.bf16.mxu0 %v587
    %619 = vmatpush1.bf16.msra.mxu0 %v586
    %620 = vmatprep.subr.bf16.mxu0 %v589
    %621 = vmatpush1.bf16.msra.mxu0 %v588
    %622 = vmatprep.subr.bf16.mxu0 %v591
    %623 = vmatpush1.bf16.msra.mxu0 %v590
    %624 = vmatprep.subr.bf16.mxu0 %v593
    %625 = vmatpush1.bf16.msra.mxu0 %v592
    %626 = vmatprep.subr.bf16.mxu0 0
    %627 = vmatpush1.bf16.msra.mxu0 0
    %628 = vmatprep.subr.bf16.mxu0 0
    %629 = vmatpush1.bf16.msra.mxu0 0
    %630 = vmatprep.subr.bf16.mxu0 0
    %631 = vmatpush1.bf16.msra.mxu0 0
    %632 = vmatprep.subr.bf16.mxu0 0
    %633 = vmatpush1.bf16.msra.mxu0 0
    %634 = vmatprep.subr.bf16.mxu0 0
    %635 = vmatpush1.bf16.msra.mxu0 0
    %636 = vmatprep.subr.bf16.mxu0 0
    %637 = vmatpush1.bf16.msra.mxu0 0
    %638 = vmatprep.subr.bf16.mxu0 0
    %639 = vmatpush1.bf16.msra.mxu0 0
    %640 = vmatprep.subr.bf16.mxu0 0
    %641 = vmatpush1.bf16.msra.mxu0 0
    %642 = vmatprep.mubr.bf16.mxu0 0
    %643 = vmatmul.mubr.bf16.gmra.mrb[0].mxu0 %v503
    %v644 = vpop.f32.mrb[0].mxu0
    %v645 = vadd.f32 %v525, %v644
    %v646 = vpop.f32.mrb[0].mxu0
    %v647 = vadd.f32 %v529, %v646
    %v648 = vpop.f32.mrb[0].mxu0
    %v649 = vpop.f32.mrb[0].mxu0
    %650 = vdwg.mxu0
    %v651 = vmax.f32 %v645, 0.0
    %v652 = vmax.f32 %v647, 0.0
    %v653 = vrot.slane %v651, 4
    %v654 = vadd.f32 %v651, %v653
    %v655 = vrot.slane %v654, 2
    %v656 = vadd.f32 %v654, %v655
    %v657 = vrot.slane %v656, 1
    %v658 = vadd.f32 %v656, %v657
    %v659 = vrot.slane %v652, 4
    %v660 = vadd.f32 %v652, %v659
    %v661 = vrot.slane %v660, 2
    %v662 = vadd.f32 %v660, %v661
    %v663 = vrot.slane %v662, 1
    %v664 = vadd.f32 %v662, %v663
    %v665 = vmul.f32 %v658, 0.125
    %v666 = vmul.f32 %v664, 0.125
    %v667 = vmul.f32 %v651, %v651
    %v668 = vmul.f32 %v652, %v652
    %v669 = vrot.slane %v667, 4
    %v670 = vadd.f32 %v667, %v669
    %v671 = vrot.slane %v670, 2
    %v672 = vadd.f32 %v670, %v671
    %v673 = vrot.slane %v672, 1
    %v674 = vadd.f32 %v672, %v673
    %v675 = vrot.slane %v668, 4
    %v676 = vadd.f32 %v668, %v675
    %v677 = vrot.slane %v676, 2
    %v678 = vadd.f32 %v676, %v677
    %v679 = vrot.slane %v678, 1
    %v680 = vadd.f32 %v678, %v679
    %v681 = vmul.f32 %v674, 0.125
    %v682 = vmul.f32 %v680, 0.125
    %v683 = vmul.f32 %v665, %v665
    %v684 = vmul.f32 %v666, %v666
    %v685 = vsub.f32 %v681, %v683
    %v686 = vsub.f32 %v682, %v684
    %v687 = vmax.f32 %v685, 0.0
    %v688 = vmax.f32 %v686, 0.0
    %v689 = vsub.f32 %v651, %v665
    %v690 = vsub.f32 %v652, %v666
    %v691 = vadd.f32 %v687, 1e-05
    %v692 = vadd.f32 %v688, 1e-05
    %v693 = vrsqrt.pop %v691
    %v694 = vrsqrt.pop %v692
    %v695 = vmul.f32 %v689, %v693
    %v696 = vmul.f32 %v690, %v694
    %v697 = vlaneseq
    %v698 = vshrl.u32 %v697, 7
    %v699 = vsub.s32 1, %v698
    %v700 = vrot.slane %v520, %v699
    %v701 = vlaneseq
    %v702 = vshrl.u32 %v701, 7
    %v703 = vsub.s32 1, %v702
    %v704 = vrot.slane %v521, %v703
    %v705 = vmul.f32 %v695, %v700
    %v706 = vmul.f32 %v696, %v704
    %v707 = vlaneseq
    %v708 = vshrl.u32 %v707, 7
    %v709 = vsub.s32 2, %v708
    %v710 = vrot.slane %v520, %v709
    %v711 = vlaneseq
    %v712 = vshrl.u32 %v711, 7
    %v713 = vsub.s32 2, %v712
    %v714 = vrot.slane %v521, %v713
    %v715 = vadd.f32 %v705, %v710
    %v716 = vadd.f32 %v706, %v714
    %v717 = vpack.c.bf16 %v715, %v715
    %v718 = vpack.c.bf16 %v716, %v716
    %v719 = vld [vmem:[#allocation12] sm:$0xff]
    %v720 = vld [vmem:[#allocation12 + $0x8] sm:$0xff]
    %v721 = vld [vmem:[#allocation12 + $0x10] sm:$0xff]
    %v722 = vld [vmem:[#allocation12 + $0x18] sm:$0xff]
    %v723 = vld [vmem:[#allocation12 + $0x20] sm:$0xff]
    %v724 = vld [vmem:[#allocation12 + $0x28] sm:$0xff]
    %v725 = vld [vmem:[#allocation12 + $0x30] sm:$0xff]
    %v726 = vld [vmem:[#allocation12 + $0x38] sm:$0xff]
    %v727 = vld [vmem:[#allocation12 + $0x40] sm:$0xff]
    %v728 = vld [vmem:[#allocation12 + $0x48] sm:$0xff]
    %v729 = vld [vmem:[#allocation12 + $0x50] sm:$0xff]
    %v730 = vld [vmem:[#allocation12 + $0x58] sm:$0xff]
    %v731 = vld [vmem:[#allocation12 + $0x60] sm:$0xff]
    %v732 = vld [vmem:[#allocation12 + $0x68] sm:$0xff]
    %v733 = vld [vmem:[#allocation12 + $0x70] sm:$0xff]
    %v734 = vld [vmem:[#allocation12 + $0x78] sm:$0xff]
    %v735 = vld [vmem:[#allocation12 + $0x80] sm:$0xff]
    %v736 = vld [vmem:[#allocation12 + $0x88] sm:$0xff]
    %v737 = vld [vmem:[#allocation12 + $0x90] sm:$0xff]
    %v738 = vld [vmem:[#allocation12 + $0x98] sm:$0xff]
    %v739 = vld [vmem:[#allocation12 + $0xa0] sm:$0xff]
    %v740 = vld [vmem:[#allocation12 + $0xa8] sm:$0xff]
    %v741 = vld [vmem:[#allocation12 + $0xb0] sm:$0xff]
    %v742 = vld [vmem:[#allocation12 + $0xb8] sm:$0xff]
    %v743 = vld [vmem:[#allocation12 + $0xc0] sm:$0xff]
    %v744 = vld [vmem:[#allocation12 + $0xc8] sm:$0xff]
    %v745 = vld [vmem:[#allocation12 + $0xd0] sm:$0xff]
    %v746 = vld [vmem:[#allocation12 + $0xd8] sm:$0xff]
    %v747 = vld [vmem:[#allocation12 + $0xe0] sm:$0xff]
    %v748 = vld [vmem:[#allocation12 + $0xe8] sm:$0xff]
    %v749 = vld [vmem:[#allocation12 + $0xf0] sm:$0xff]
    %v750 = vld [vmem:[#allocation12 + $0xf8] sm:$0xff]
    %s751 = scalar_lea.vmem [#allocation13], 16
    %v752 = vld [vmem:[%s751] sm:$0xff]
    %v753 = vld [vmem:[%s751 + $0x8] sm:$0xff]
    %v754 = vlaneseq
    %v755 = vshrl.u32 %v754, 7
    %v756 = vsub.s32 0, %v755
    %v757 = vrot.slane %v752, %v756
    %v758 = vlaneseq
    %v759 = vshrl.u32 %v758, 7
    %v760 = vsub.s32 0, %v759
    %v761 = vrot.slane %v753, %v760
    %v794 = vunpack.c.l.b16 %v719
    %v795 = vunpack.c.h.b16 %v719
    %v796 = vunpack.c.l.b16 %v720
    %v797 = vunpack.c.h.b16 %v720
    %v798 = vunpack.c.l.b16 %v721
    %v799 = vunpack.c.h.b16 %v721
    %v800 = vunpack.c.l.b16 %v722
    %v801 = vunpack.c.h.b16 %v722
    %v802 = vunpack.c.l.b16 %v723
    %v803 = vunpack.c.h.b16 %v723
    %v804 = vunpack.c.l.b16 %v724
    %v805 = vunpack.c.h.b16 %v724
    %v806 = vunpack.c.l.b16 %v725
    %v807 = vunpack.c.h.b16 %v725
    %v808 = vunpack.c.l.b16 %v726
    %v809 = vunpack.c.h.b16 %v726
    %v810 = vunpack.c.l.b16 %v727
    %v811 = vunpack.c.h.b16 %v727
    %v812 = vunpack.c.l.b16 %v728
    %v813 = vunpack.c.h.b16 %v728
    %v814 = vunpack.c.l.b16 %v729
    %v815 = vunpack.c.h.b16 %v729
    %v816 = vunpack.c.l.b16 %v730
    %v817 = vunpack.c.h.b16 %v730
    %v818 = vunpack.c.l.b16 %v731
    %v819 = vunpack.c.h.b16 %v731
    %v820 = vunpack.c.l.b16 %v732
    %v821 = vunpack.c.h.b16 %v732
    %v822 = vunpack.c.l.b16 %v733
    %v823 = vunpack.c.h.b16 %v733
    %v824 = vunpack.c.l.b16 %v734
    %v825 = vunpack.c.h.b16 %v734
    %v826 = vunpack.c.l.b16 %v735
    %v827 = vunpack.c.h.b16 %v735
    %v828 = vunpack.c.l.b16 %v736
    %v829 = vunpack.c.h.b16 %v736
    %v830 = vunpack.c.l.b16 %v737
    %v831 = vunpack.c.h.b16 %v737
    %v832 = vunpack.c.l.b16 %v738
    %v833 = vunpack.c.h.b16 %v738
    %v834 = vunpack.c.l.b16 %v739
    %v835 = vunpack.c.h.b16 %v739
    %v836 = vunpack.c.l.b16 %v740
    %v837 = vunpack.c.h.b16 %v740
    %v838 = vunpack.c.l.b16 %v741
    %v839 = vunpack.c.h.b16 %v741
    %v840 = vunpack.c.l.b16 %v742
    %v841 = vunpack.c.h.b16 %v742
    %v842 = vunpack.c.l.b16 %v743
    %v843 = vunpack.c.h.b16 %v743
    %v844 = vunpack.c.l.b16 %v744
    %v845 = vunpack.c.h.b16 %v744
    %v846 = vunpack.c.l.b16 %v745
    %v847 = vunpack.c.h.b16 %v745
    %v848 = vunpack.c.l.b16 %v746
    %v849 = vunpack.c.h.b16 %v746
    %v850 = vunpack.c.l.b16 %v747
    %v851 = vunpack.c.h.b16 %v747
    %v852 = vunpack.c.l.b16 %v748
    %v853 = vunpack.c.h.b16 %v748
    %v854 = vunpack.c.l.b16 %v749
    %v855 = vunpack.c.h.b16 %v749
    %v856 = vunpack.c.l.b16 %v750
    %v857 = vunpack.c.h.b16 %v750
    %v858 = vpack.c.b16 %v796, %v794
    %v859 = vpack.c.b16 %v797, %v795
    %v860 = vpack.c.b16 %v800, %v798
    %v861 = vpack.c.b16 %v801, %v799
    %v862 = vpack.c.b16 %v804, %v802
    %v863 = vpack.c.b16 %v805, %v803
    %v864 = vpack.c.b16 %v808, %v806
    %v865 = vpack.c.b16 %v809, %v807
    %v866 = vpack.c.b16 %v812, %v810
    %v867 = vpack.c.b16 %v813, %v811
    %v868 = vpack.c.b16 %v816, %v814
    %v869 = vpack.c.b16 %v817, %v815
    %v870 = vpack.c.b16 %v820, %v818
    %v871 = vpack.c.b16 %v821, %v819
    %v872 = vpack.c.b16 %v824, %v822
    %v873 = vpack.c.b16 %v825, %v823
    %v874 = vpack.c.b16 %v828, %v826
    %v875 = vpack.c.b16 %v829, %v827
    %v876 = vpack.c.b16 %v832, %v830
    %v877 = vpack.c.b16 %v833, %v831
    %v878 = vpack.c.b16 %v836, %v834
    %v879 = vpack.c.b16 %v837, %v835
    %v880 = vpack.c.b16 %v840, %v838
    %v881 = vpack.c.b16 %v841, %v839
    %v882 = vpack.c.b16 %v844, %v842
    %v883 = vpack.c.b16 %v845, %v843
    %v884 = vpack.c.b16 %v848, %v846
    %v885 = vpack.c.b16 %v849, %v847
    %v886 = vpack.c.b16 %v852, %v850
    %v887 = vpack.c.b16 %v853, %v851
    %v888 = vpack.c.b16 %v856, %v854
    %v889 = vpack.c.b16 %v857, %v855
    %922 = vmatprep.subr.bf16.mxu0 %v859
    %923 = vmatpush1.bf16.msra.mxu0 %v858
    %924 = vmatprep.subr.bf16.mxu0 %v861
    %925 = vmatpush1.bf16.msra.mxu0 %v860
    %926 = vmatprep.subr.bf16.mxu0 %v863
    %927 = vmatpush1.bf16.msra.mxu0 %v862
    %928 = vmatprep.subr.bf16.mxu0 %v865
    %929 = vmatpush1.bf16.msra.mxu0 %v864
    %930 = vmatprep.subr.bf16.mxu0 %v867
    %931 = vmatpush1.bf16.msra.mxu0 %v866
    %932 = vmatprep.subr.bf16.mxu0 %v869
    %933 = vmatpush1.bf16.msra.mxu0 %v868
    %934 = vmatprep.subr.bf16.mxu0 %v871
    %935 = vmatpush1.bf16.msra.mxu0 %v870
    %936 = vmatprep.subr.bf16.mxu0 %v873
    %937 = vmatpush1.bf16.msra.mxu0 %v872
    %938 = vmatprep.subr.bf16.mxu0 %v875
    %939 = vmatpush1.bf16.msra.mxu0 %v874
    %940 = vmatprep.subr.bf16.mxu0 %v877
    %941 = vmatpush1.bf16.msra.mxu0 %v876
    %942 = vmatprep.subr.bf16.mxu0 %v879
    %943 = vmatpush1.bf16.msra.mxu0 %v878
    %944 = vmatprep.subr.bf16.mxu0 %v881
    %945 = vmatpush1.bf16.msra.mxu0 %v880
    %946 = vmatprep.subr.bf16.mxu0 %v883
    %947 = vmatpush1.bf16.msra.mxu0 %v882
    %948 = vmatprep.subr.bf16.mxu0 %v885
    %949 = vmatpush1.bf16.msra.mxu0 %v884
    %950 = vmatprep.subr.bf16.mxu0 %v887
    %951 = vmatpush1.bf16.msra.mxu0 %v886
    %952 = vmatprep.subr.bf16.mxu0 %v889
    %953 = vmatpush1.bf16.msra.mxu0 %v888
    %954 = vmatprep.mubr.bf16.mxu0 %v718
    %955 = vmatmul.mubr.bf16.gmra.mrb[0].mxu0 %v717
    %v956 = vpop.f32.mrb[0].mxu0
    %v957 = vadd.f32 %v757, %v956
    %v958 = vpop.f32.mrb[0].mxu0
    %v959 = vadd.f32 %v761, %v958
    %v960 = vpop.f32.mrb[0].mxu0
    %v961 = vpop.f32.mrb[0].mxu0
    %962 = vdwg.mxu0
    %v963 = vmax.f32 %v957, 0.0
    %v964 = vmax.f32 %v959, 0.0
    %v965 = vrot.slane %v963, 4
    %v966 = vadd.f32 %v963, %v965
    %v967 = vrot.slane %v966, 2
    %v968 = vadd.f32 %v966, %v967
    %v969 = vrot.slane %v968, 1
    %v970 = vadd.f32 %v968, %v969
    %v971 = vrot.slane %v964, 4
    %v972 = vadd.f32 %v964, %v971
    %v973 = vrot.slane %v972, 2
    %v974 = vadd.f32 %v972, %v973
    %v975 = vrot.slane %v974, 1
    %v976 = vadd.f32 %v974, %v975
    %v977 = vmul.f32 %v970, 0.125
    %v978 = vmul.f32 %v976, 0.125
    %v979 = vmul.f32 %v963, %v963
    %v980 = vmul.f32 %v964, %v964
    %v981 = vrot.slane %v979, 4
    %v982 = vadd.f32 %v979, %v981
    %v983 = vrot.slane %v982, 2
    %v984 = vadd.f32 %v982, %v983
    %v985 = vrot.slane %v984, 1
    %v986 = vadd.f32 %v984, %v985
    %v987 = vrot.slane %v980, 4
    %v988 = vadd.f32 %v980, %v987
    %v989 = vrot.slane %v988, 2
    %v990 = vadd.f32 %v988, %v989
    %v991 = vrot.slane %v990, 1
    %v992 = vadd.f32 %v990, %v991
    %v993 = vmul.f32 %v986, 0.125
    %v994 = vmul.f32 %v992, 0.125
    %v995 = vmul.f32 %v977, %v977
    %v996 = vmul.f32 %v978, %v978
    %v997 = vsub.f32 %v993, %v995
    %v998 = vsub.f32 %v994, %v996
    %v999 = vmax.f32 %v997, 0.0
    %v1000 = vmax.f32 %v998, 0.0
    %v1001 = vsub.f32 %v963, %v977
    %v1002 = vsub.f32 %v964, %v978
    %v1003 = vadd.f32 %v999, 1e-05
    %v1004 = vadd.f32 %v1000, 1e-05
    %v1005 = vrsqrt.pop %v1003
    %v1006 = vrsqrt.pop %v1004
    %v1007 = vmul.f32 %v1001, %v1005
    %v1008 = vmul.f32 %v1002, %v1006
    %v1009 = vlaneseq
    %v1010 = vshrl.u32 %v1009, 7
    %v1011 = vsub.s32 1, %v1010
    %v1012 = vrot.slane %v752, %v1011
    %v1013 = vlaneseq
    %v1014 = vshrl.u32 %v1013, 7
    %v1015 = vsub.s32 1, %v1014
    %v1016 = vrot.slane %v753, %v1015
    %v1017 = vmul.f32 %v1007, %v1012
    %v1018 = vmul.f32 %v1008, %v1016
    %v1019 = vlaneseq
    %v1020 = vshrl.u32 %v1019, 7
    %v1021 = vsub.s32 2, %v1020
    %v1022 = vrot.slane %v752, %v1021
    %v1023 = vlaneseq
    %v1024 = vshrl.u32 %v1023, 7
    %v1025 = vsub.s32 2, %v1024
    %v1026 = vrot.slane %v753, %v1025
    %v1027 = vadd.f32 %v1017, %v1022
    %v1028 = vadd.f32 %v1018, %v1026
    %v1029 = vpack.c.bf16 %v1027, %v1027
    %v1030 = vpack.c.bf16 %v1028, %v1028
    %v1031 = vld [vmem:[#allocation15] sm:$0xf]
    %v1032 = vld [vmem:[#allocation15 + $0x4] sm:$0xf]
    %v1033 = vld [vmem:[#allocation15 + $0x8] sm:$0xf]
    %v1034 = vld [vmem:[#allocation15 + $0xc] sm:$0xf]
    %v1035 = vld [vmem:[#allocation15 + $0x10] sm:$0xf]
    %v1036 = vld [vmem:[#allocation15 + $0x14] sm:$0xf]
    %v1037 = vld [vmem:[#allocation15 + $0x18] sm:$0xf]
    %v1038 = vld [vmem:[#allocation15 + $0x1c] sm:$0xf]
    %v1039 = vld [vmem:[#allocation15 + $0x20] sm:$0xf]
    %v1040 = vld [vmem:[#allocation15 + $0x24] sm:$0xf]
    %v1041 = vld [vmem:[#allocation15 + $0x28] sm:$0xf]
    %v1042 = vld [vmem:[#allocation15 + $0x2c] sm:$0xf]
    %v1043 = vld [vmem:[#allocation15 + $0x30] sm:$0xf]
    %v1044 = vld [vmem:[#allocation15 + $0x34] sm:$0xf]
    %v1045 = vld [vmem:[#allocation15 + $0x38] sm:$0xf]
    %v1046 = vld [vmem:[#allocation15 + $0x3c] sm:$0xf]
    %v1047 = vld [vmem:[#allocation15 + $0x40] sm:$0xf]
    %v1048 = vld [vmem:[#allocation15 + $0x44] sm:$0xf]
    %v1049 = vld [vmem:[#allocation15 + $0x48] sm:$0xf]
    %v1050 = vld [vmem:[#allocation15 + $0x4c] sm:$0xf]
    %v1051 = vld [vmem:[#allocation15 + $0x50] sm:$0xf]
    %v1052 = vld [vmem:[#allocation15 + $0x54] sm:$0xf]
    %v1053 = vld [vmem:[#allocation15 + $0x58] sm:$0xf]
    %v1054 = vld [vmem:[#allocation15 + $0x5c] sm:$0xf]
    %v1055 = vld [vmem:[#allocation15 + $0x60] sm:$0xf]
    %v1056 = vld [vmem:[#allocation15 + $0x64] sm:$0xf]
    %v1057 = vld [vmem:[#allocation15 + $0x68] sm:$0xf]
    %v1058 = vld [vmem:[#allocation15 + $0x6c] sm:$0xf]
    %v1059 = vld [vmem:[#allocation15 + $0x70] sm:$0xf]
    %v1060 = vld [vmem:[#allocation15 + $0x74] sm:$0xf]
    %v1061 = vld [vmem:[#allocation15 + $0x78] sm:$0xf]
    %v1062 = vld [vmem:[#allocation15 + $0x7c] sm:$0xf]
    %v1095 = vunpack.c.l.b16 %v1031
    %v1096 = vunpack.c.l.b16 %v1032
    %v1097 = vunpack.c.l.b16 %v1033
    %v1098 = vunpack.c.l.b16 %v1034
    %v1099 = vunpack.c.l.b16 %v1035
    %v1100 = vunpack.c.l.b16 %v1036
    %v1101 = vunpack.c.l.b16 %v1037
    %v1102 = vunpack.c.l.b16 %v1038
    %v1103 = vunpack.c.l.b16 %v1039
    %v1104 = vunpack.c.l.b16 %v1040
    %v1105 = vunpack.c.l.b16 %v1041
    %v1106 = vunpack.c.l.b16 %v1042
    %v1107 = vunpack.c.l.b16 %v1043
    %v1108 = vunpack.c.l.b16 %v1044
    %v1109 = vunpack.c.l.b16 %v1045
    %v1110 = vunpack.c.l.b16 %v1046
    %v1111 = vunpack.c.l.b16 %v1047
    %v1112 = vunpack.c.l.b16 %v1048
    %v1113 = vunpack.c.l.b16 %v1049
    %v1114 = vunpack.c.l.b16 %v1050
    %v1115 = vunpack.c.l.b16 %v1051
    %v1116 = vunpack.c.l.b16 %v1052
    %v1117 = vunpack.c.l.b16 %v1053
    %v1118 = vunpack.c.l.b16 %v1054
    %v1119 = vunpack.c.l.b16 %v1055
    %v1120 = vunpack.c.l.b16 %v1056
    %v1121 = vunpack.c.l.b16 %v1057
    %v1122 = vunpack.c.l.b16 %v1058
    %v1123 = vunpack.c.l.b16 %v1059
    %v1124 = vunpack.c.l.b16 %v1060
    %v1125 = vunpack.c.l.b16 %v1061
    %v1126 = vunpack.c.l.b16 %v1062
    %v1127 = vpack.c.b16 %v1096, %v1095
    %v1128 = vpack.c.b16 %v1098, %v1097
    %v1129 = vpack.c.b16 %v1100, %v1099
    %v1130 = vpack.c.b16 %v1102, %v1101
    %v1131 = vpack.c.b16 %v1104, %v1103
    %v1132 = vpack.c.b16 %v1106, %v1105
    %v1133 = vpack.c.b16 %v1108, %v1107
    %v1134 = vpack.c.b16 %v1110, %v1109
    %v1135 = vpack.c.b16 %v1112, %v1111
    %v1136 = vpack.c.b16 %v1114, %v1113
    %v1137 = vpack.c.b16 %v1116, %v1115
    %v1138 = vpack.c.b16 %v1118, %v1117
    %v1139 = vpack.c.b16 %v1120, %v1119
    %v1140 = vpack.c.b16 %v1122, %v1121
    %v1141 = vpack.c.b16 %v1124, %v1123
    %v1142 = vpack.c.b16 %v1126, %v1125
    %1159 = vmatprep.subr.bf16.mxu0 0
    %1160 = vmatpush1.bf16.msra.mxu0 %v1127
    %1161 = vmatprep.subr.bf16.mxu0 0
    %1162 = vmatpush1.bf16.msra.mxu0 %v1128
    %1163 = vmatprep.subr.bf16.mxu0 0
    %1164 = vmatpush1.bf16.msra.mxu0 %v1129
    %1165 = vmatprep.subr.bf16.mxu0 0
    %1166 = vmatpush1.bf16.msra.mxu0 %v1130
    %1167 = vmatprep.subr.bf16.mxu0 0
    %1168 = vmatpush1.bf16.msra.mxu0 %v1131
    %1169 = vmatprep.subr.bf16.mxu0 0
    %1170 = vmatpush1.bf16.msra.mxu0 %v1132
    %1171 = vmatprep.subr.bf16.mxu0 0
    %1172 = vmatpush1.bf16.msra.mxu0 %v1133
    %1173 = vmatprep.subr.bf16.mxu0 0
    %1174 = vmatpush1.bf16.msra.mxu0 %v1134
    %1175 = vmatprep.subr.bf16.mxu0 0
    %1176 = vmatpush1.bf16.msra.mxu0 %v1135
    %1177 = vmatprep.subr.bf16.mxu0 0
    %1178 = vmatpush1.bf16.msra.mxu0 %v1136
    %1179 = vmatprep.subr.bf16.mxu0 0
    %1180 = vmatpush1.bf16.msra.mxu0 %v1137
    %1181 = vmatprep.subr.bf16.mxu0 0
    %1182 = vmatpush1.bf16.msra.mxu0 %v1138
    %1183 = vmatprep.subr.bf16.mxu0 0
    %1184 = vmatpush1.bf16.msra.mxu0 %v1139
    %1185 = vmatprep.subr.bf16.mxu0 0
    %1186 = vmatpush1.bf16.msra.mxu0 %v1140
    %1187 = vmatprep.subr.bf16.mxu0 0
    %1188 = vmatpush1.bf16.msra.mxu0 %v1141
    %1189 = vmatprep.subr.bf16.mxu0 0
    %1190 = vmatpush1.bf16.msra.mxu0 %v1142
    %1191 = vmatprep.mubr.bf16.mxu0 %v1030
    %1192 = vmatmul.mubr.bf16.gmra.mrb[0].mxu0 %v1029
    %v1193 = vpop.f32.mrb[0].mxu0
    %v1194 = vadd.f32 0.0, %v1193
    %v1195 = vpop.f32.mrb[0].mxu0
    %v1196 = vpop.f32.mrb[0].mxu0
    %v1197 = vpop.f32.mrb[0].mxu0
    %1198 = vdwg.mxu0
    %1199 = vst [vmem:[%s10] sm:$0xff] %v498
    %1200 = vst [vmem:[%s10 + $0x8] sm:$0xff] %v1194
    // Predicated region
    $region78: #{forward.1} parent=1 // pred_check
      _
    $region79: #{forward.1} parent=1 // pred_check_branch
      %1202 = sbr.rel (0) target = $region81
    $region80: #{forward.1} parent=1 // pred_region
      _
    $region81: #{forward.1} parent=1 // pred_fallthru
      _
    // Predicated region
    $region82: #{forward.1} parent=1 // pred_check
      _
    $region83: #{forward.1} parent=1 // pred_check_branch
      %1204 = sbr.rel (0) target = $region85
    $region84: #{forward.1} parent=1 // pred_region
      _
    $region85: #{forward.1} parent=1 // pred_fallthru
      _
    %1205 = vsyncpa [#allocation3], 1
    %1206 = vsyncpa [#allocation5], 1
    %1207 = vsyncpa [#allocation8], 1
    %1208 = vsyncpa [#allocation11], 1
    %1209 = vsyncpa [#allocation14], 1

</llo_original>
